<compile_context>
chip_gen: v5e
topology: v5e:2x2
jax: 0.10.0
libtpu: 0.0.40
codegen_flags: <defaults>
</compile_context>

<pallas_src>
import functools

import numpy as np
import jax
import jax.numpy as jnp
from jax.experimental import pallas as pl
from jax.experimental.pallas import tpu as pltpu


def _tree_sum(terms):
    """Balanced-tree add: breaks serial VALU dependency chains."""
    terms = list(terms)
    while len(terms) > 1:
        nxt = [terms[i] + terms[i + 1] for i in range(0, len(terms) - 1, 2)]
        if len(terms) % 2:
            nxt.append(terms[-1])
        terms = nxt
    return terms[0]


# ----------------------------- Fused CBAM kernel -----------------------------
def cbam_kernel(x_ref, w1t_ref, w2_ref, wcol_ref, cmask_ref, rmask_ref, o_ref,
                *, H, W, K):
    """Fused SE (channel) + 7x7 spatial attention for the whole batch.

    x_ref:     (B, C, H*W)  activations, lane-dense
    w1t_ref:   (C, Cr)      fc1.weight transposed
    w2_ref:    (C, Cr)      fc2.weight
    wcol_ref:  (2B, K*K)    conv weight columns, rows = [mean-ch x B | max-ch x B]
    cmask_ref: (K, H*W)     column-validity masks per dx (precomputed constants)
    rmask_ref: (K, H*W)     row-validity masks per dy (precomputed constants)
    o_ref:     (B, C, H*W)
    """
    HW = H * W
    P = K // 2
    B = x_ref.shape[0]

    xv = x_ref[...]                                                # (B, C, HW) f32

    # ---------------- SE / channel attention (tiny FC on the VPU) -------------
    avg = jnp.sum(xv, axis=2, keepdims=True) * (1.0 / HW)          # (B, C, 1)
    h = jnp.maximum(
        jnp.sum(w1t_ref[...][None] * avg, axis=1, keepdims=True), 0.0)   # (B, 1, Cr)
    gate = jax.nn.sigmoid(
        jnp.sum(w2_ref[...][None] * h, axis=2, keepdims=True))            # (B, C, 1)
    xc = xv * gate                                                 # (B, C, HW)

    # ---------------- Spatial attention: factorized 7x7 conv ------------------
    mean_map = jnp.mean(xc, axis=1)                                # (B, HW)
    max_map = jnp.max(xc, axis=1)                                  # (B, HW)
    pooled = jnp.concatenate([mean_map, max_map], axis=0)          # (2B, HW) packed

    # dx-shifted, column-masked copies: K lane rolls on the packed maps.
    sdx = []
    for ix in range(K):
        dx = ix - P
        shift = (-dx) % HW
        s = pooled if shift == 0 else pltpu.roll(pooled, shift=shift, axis=1)
        sdx.append(s * cmask_ref[ix:ix + 1])                       # (2B, HW)

    # Per-row weighted sums (VPU), then one dy*W roll per row: K more lane rolls.
    acc_terms = []
    for iy in range(K):
        dy = iy - P
        row = _tree_sum([wcol_ref[:, iy * K + ix:iy * K + ix + 1] * sdx[ix]
                         for ix in range(K)])                      # (2B, HW)
        shift = (-(dy * W)) % HW
        if shift != 0:
            row = pltpu.roll(row, shift=shift, axis=1)
        acc_terms.append(row * rmask_ref[iy:iy + 1])
    acc = _tree_sum(acc_terms)                                     # (2B, HW)

    conv = acc[:B] + acc[B:]                                       # (B, HW): mean + max channels
    attn = jax.nn.sigmoid(conv)                                    # (B, HW)

    o_ref[...] = (xc * attn[:, None, :]).astype(o_ref.dtype)       # lane-dense store


# ----------------------------- One-time parameter prep ------------------------
def _border_masks(H, W, K):
    """Zero-padding validity masks for the flattened (row-major) HxW layout."""
    P = K // 2
    lane = np.arange(H * W)
    r = lane // W
    c = lane % W
    cmask = np.stack([((c + (ix - P) >= 0) & (c + (ix - P) < W)).astype(np.float32)
                      for ix in range(K)])                         # (K, HW)
    rmask = np.stack([((r + (iy - P) >= 0) & (r + (iy - P) < H)).astype(np.float32)
                      for iy in range(K)])                         # (K, HW)
    return jnp.asarray(cmask), jnp.asarray(rmask)


def prepare_params(w1, w2, wconv, B, H, W):
    """Called once at parameter-prep time (not on the forward path)."""
    K = wconv.shape[-1]
    w1t = jnp.transpose(w1)                                        # (C, Cr)
    wflat = wconv.reshape(2, K * K)                                # (2, K*K)
    wcol = jnp.concatenate(
        [jnp.tile(wflat[0:1], (B, 1)), jnp.tile(wflat[1:2], (B, 1))], axis=0)  # (2B, K*K)
    cmask, rmask = _border_masks(H, W, K)
    return w1t, w2, wcol, cmask, rmask


# ----------------------------- Wrapper ----------------------------------------
@jax.jit
def testM_forward(x, w1t, w2, wcol, cmask, rmask):
    """CBAM: channel attention (SE) then spatial attention, one fused kernel."""
    B, C, H, W = x.shape
    HW = H * W
    K = cmask.shape[0]
    xr = x.reshape(B, C, HW)                                       # lane-dense layout
    out = pl.pallas_call(
        functools.partial(cbam_kernel, H=H, W=W, K=K),
        out_shape=jax.ShapeDtypeStruct((B, C, HW), x.dtype),
        # No grid: the whole batch (~64 KiB) is one VMEM-resident block; a single
        # DMA in/out avoids per-grid-step overhead on single-TC v5e/v6e.
    )(xr, w1t, w2, wcol, cmask, rmask)
    return out.reshape(B, C, H, W)


# ----------------------------- Pure-JAX reference ------------------------------
def testM_ref(x, w1, w2, wconv):
    y = jnp.mean(x, axis=(2, 3))                                   # (B, C) adaptive avg pool
    h = jnp.maximum(y @ w1.T, 0.0)                                 # Linear(C, C//r), no bias
    s = jax.nn.sigmoid(h @ w2.T)                                   # Linear(C//r, C), no bias
    xc = x * s[:, :, None, None]
    mean_c = jnp.mean(xc, axis=1, keepdims=True)
    max_c = jnp.max(xc, axis=1, keepdims=True)
    inp = jnp.concatenate([mean_c, max_c], axis=1)                 # (B, 2, H, W)
    conv = jax.lax.conv_general_dilated(
        inp, wconv[None], window_strides=(1, 1), padding=[(3, 3), (3, 3)],
        dimension_numbers=("NCHW", "OIHW", "NCHW"))                # (B, 1, H, W)
    return xc * jax.nn.sigmoid(conv)


# ----------------------------- Main --------------------------------------------
if __name__ == "__main__":
    B, C, H, W = 2, 32, 16, 16
    reduction = 16
    Cr = C // reduction  # 2

    key = jax.random.PRNGKey(0)
    kx, k1, k2, k3 = jax.random.split(key, 4)
    x = jax.random.normal(kx, (B, C, H, W), dtype=jnp.float32)
    # fc1.weight: (C//r, C), fc2.weight: (C, C//r), cv1.weight: (1, 2, 7, 7) -> (2, 7, 7)
    w1 = 0.2 * jax.random.normal(k1, (Cr, C), dtype=jnp.float32)
    w2 = 0.2 * jax.random.normal(k2, (C, Cr), dtype=jnp.float32)
    wconv = 0.1 * jax.random.normal(k3, (2, 7, 7), dtype=jnp.float32)

    params = prepare_params(w1, w2, wconv, B, H, W)                # one-time prep

    out = jax.block_until_ready(testM_forward(x, *params))
    ref = jax.block_until_ready(testM_ref(x, w1, w2, wconv))

    assert out.shape == (B, C, H, W)
    err = float(jnp.max(jnp.abs(out - ref)))
    assert jnp.allclose(out, ref, atol=1e-4, rtol=1e-4), err
    print("KERNEL_OK")
</pallas_src>

<mosaic_0001>
module attributes {stable_mosaic.version = 11 : i64} {
  func.func @cbam_kernel(%arg0: memref<2x32x256xf32, #tpu.memory_space<vmem>>, %arg1: memref<32x2xf32, #tpu.memory_space<vmem>>, %arg2: memref<32x2xf32, #tpu.memory_space<vmem>>, %arg3: memref<4x49xf32, #tpu.memory_space<vmem>>, %arg4: memref<7x256xf32, #tpu.memory_space<vmem>>, %arg5: memref<7x256xf32, #tpu.memory_space<vmem>>, %arg6: memref<2x32x256xf32, #tpu.memory_space<vmem>>) attributes {dimension_semantics = [], scalar_prefetch = 0 : i64, scratch_operands = 0 : i64, tpu.core_type = #tpu.core_type<tc>} {
    %c0 = arith.constant 0 : index
    %c0_0 = arith.constant 0 : index
    %c0_1 = arith.constant 0 : index
    %0 = vector.load %arg0[%c0, %c0_0, %c0_1] : memref<2x32x256xf32, #tpu.memory_space<vmem>>, vector<2x32x256xf32>
    %cst = arith.constant dense<0.000000e+00> : vector<2x32xf32>
    %1 = vector.multi_reduction <add>, %0, %cst [2] : vector<2x32x256xf32> to vector<2x32xf32>
    %2 = vector.shape_cast %1 : vector<2x32xf32> to vector<2x32x1xf32>
    %cst_2 = arith.constant 3.906250e-03 : f32
    %3 = vector.broadcast %cst_2 : f32 to vector<2x32x1xf32>
    %4 = arith.mulf %2, %3 : vector<2x32x1xf32>
    %c0_3 = arith.constant 0 : index
    %c0_4 = arith.constant 0 : index
    %5 = vector.load %arg1[%c0_3, %c0_4] : memref<32x2xf32, #tpu.memory_space<vmem>>, vector<32x2xf32>
    %6 = vector.shape_cast %5 : vector<32x2xf32> to vector<1x32x2xf32>
    %7 = vector.broadcast %6 : vector<1x32x2xf32> to vector<2x32x2xf32>
    %8 = vector.broadcast %4 : vector<2x32x1xf32> to vector<2x32x2xf32>
    %9 = arith.mulf %7, %8 : vector<2x32x2xf32>
    %cst_5 = arith.constant dense<0.000000e+00> : vector<2x2xf32>
    %10 = vector.multi_reduction <add>, %9, %cst_5 [1] : vector<2x32x2xf32> to vector<2x2xf32>
    %11 = vector.shape_cast %10 : vector<2x2xf32> to vector<2x1x2xf32>
    %cst_6 = arith.constant 0.000000e+00 : f32
    %12 = vector.broadcast %cst_6 : f32 to vector<2x1x2xf32>
    %13 = arith.maximumf %11, %12 : vector<2x1x2xf32>
    %c0_7 = arith.constant 0 : index
    %c0_8 = arith.constant 0 : index
    %14 = vector.load %arg2[%c0_7, %c0_8] : memref<32x2xf32, #tpu.memory_space<vmem>>, vector<32x2xf32>
    %15 = vector.shape_cast %14 : vector<32x2xf32> to vector<1x32x2xf32>
    %16 = vector.broadcast %15 : vector<1x32x2xf32> to vector<2x32x2xf32>
    %17 = vector.broadcast %13 : vector<2x1x2xf32> to vector<2x32x2xf32>
    %18 = arith.mulf %16, %17 : vector<2x32x2xf32>
    %cst_9 = arith.constant dense<0.000000e+00> : vector<2x32xf32>
    %19 = vector.multi_reduction <add>, %18, %cst_9 [2] : vector<2x32x2xf32> to vector<2x32xf32>
    %20 = vector.shape_cast %19 : vector<2x32xf32> to vector<2x32x1xf32>
    %21 = arith.negf %20 : vector<2x32x1xf32>
    %22 = math.exp %21 : vector<2x32x1xf32>
    %cst_10 = arith.constant 1.000000e+00 : f32
    %23 = vector.broadcast %cst_10 : f32 to vector<2x32x1xf32>
    %24 = arith.addf %23, %22 : vector<2x32x1xf32>
    %25 = arith.divf %23, %24 : vector<2x32x1xf32>
    %26 = vector.broadcast %25 : vector<2x32x1xf32> to vector<2x32x256xf32>
    %27 = arith.mulf %0, %26 : vector<2x32x256xf32>
    %cst_11 = arith.constant dense<0.000000e+00> : vector<2x256xf32>
    %28 = vector.multi_reduction <add>, %27, %cst_11 [1] : vector<2x32x256xf32> to vector<2x256xf32>
    %cst_12 = arith.constant 3.200000e+01 : f32
    %29 = vector.broadcast %cst_12 : f32 to vector<2x256xf32>
    %30 = arith.divf %28, %29 : vector<2x256xf32>
    %cst_13 = arith.constant dense<0xFF800000> : vector<2x256xf32>
    %31 = vector.multi_reduction <maximumf>, %27, %cst_13 [1] : vector<2x32x256xf32> to vector<2x256xf32>
    %32 = tpu.concatenate %30, %31 in 0 : vector<2x256xf32>, vector<2x256xf32> -> vector<4x256xf32>
    %c3_i32 = arith.constant 3 : i32
    %33 = tpu.dynamic_rotate %32 by %c3_i32 dim 1 : vector<4x256xf32>, i32 -> vector<4x256xf32>
    %c0_14 = arith.constant 0 : index
    %c0_15 = arith.constant 0 : index
    %34 = vector.load %arg4[%c0_14, %c0_15] : memref<7x256xf32, #tpu.memory_space<vmem>>, vector<1x256xf32>
    %35 = vector.broadcast %34 : vector<1x256xf32> to vector<4x256xf32>
    %36 = arith.mulf %33, %35 : vector<4x256xf32>
    %c2_i32 = arith.constant 2 : i32
    %37 = tpu.dynamic_rotate %32 by %c2_i32 dim 1 : vector<4x256xf32>, i32 -> vector<4x256xf32>
    %c1 = arith.constant 1 : index
    %c0_16 = arith.constant 0 : index
    %38 = vector.load %arg4[%c1, %c0_16] : memref<7x256xf32, #tpu.memory_space<vmem>>, vector<1x256xf32>
    %39 = vector.broadcast %38 : vector<1x256xf32> to vector<4x256xf32>
    %40 = arith.mulf %37, %39 : vector<4x256xf32>
    %c1_i32 = arith.constant 1 : i32
    %41 = tpu.dynamic_rotate %32 by %c1_i32 dim 1 : vector<4x256xf32>, i32 -> vector<4x256xf32>
    %c2 = arith.constant 2 : index
    %c0_17 = arith.constant 0 : index
    %42 = vector.load %arg4[%c2, %c0_17] : memref<7x256xf32, #tpu.memory_space<vmem>>, vector<1x256xf32>
    %43 = vector.broadcast %42 : vector<1x256xf32> to vector<4x256xf32>
    %44 = arith.mulf %41, %43 : vector<4x256xf32>
    %c3 = arith.constant 3 : index
    %c0_18 = arith.constant 0 : index
    %45 = vector.load %arg4[%c3, %c0_18] : memref<7x256xf32, #tpu.memory_space<vmem>>, vector<1x256xf32>
    %46 = vector.broadcast %45 : vector<1x256xf32> to vector<4x256xf32>
    %47 = arith.mulf %32, %46 : vector<4x256xf32>
    %c255_i32 = arith.constant 255 : i32
    %48 = tpu.dynamic_rotate %32 by %c255_i32 dim 1 : vector<4x256xf32>, i32 -> vector<4x256xf32>
    %c4 = arith.constant 4 : index
    %c0_19 = arith.constant 0 : index
    %49 = vector.load %arg4[%c4, %c0_19] : memref<7x256xf32, #tpu.memory_space<vmem>>, vector<1x256xf32>
    %50 = vector.broadcast %49 : vector<1x256xf32> to vector<4x256xf32>
    %51 = arith.mulf %48, %50 : vector<4x256xf32>
    %c254_i32 = arith.constant 254 : i32
    %52 = tpu.dynamic_rotate %32 by %c254_i32 dim 1 : vector<4x256xf32>, i32 -> vector<4x256xf32>
    %c5 = arith.constant 5 : index
    %c0_20 = arith.constant 0 : index
    %53 = vector.load %arg4[%c5, %c0_20] : memref<7x256xf32, #tpu.memory_space<vmem>>, vector<1x256xf32>
    %54 = vector.broadcast %53 : vector<1x256xf32> to vector<4x256xf32>
    %55 = arith.mulf %52, %54 : vector<4x256xf32>
    %c253_i32 = arith.constant 253 : i32
    %56 = tpu.dynamic_rotate %32 by %c253_i32 dim 1 : vector<4x256xf32>, i32 -> vector<4x256xf32>
    %c6 = arith.constant 6 : index
    %c0_21 = arith.constant 0 : index
    %57 = vector.load %arg4[%c6, %c0_21] : memref<7x256xf32, #tpu.memory_space<vmem>>, vector<1x256xf32>
    %58 = vector.broadcast %57 : vector<1x256xf32> to vector<4x256xf32>
    %59 = arith.mulf %56, %58 : vector<4x256xf32>
    %c0_22 = arith.constant 0 : index
    %c0_23 = arith.constant 0 : index
    %60 = vector.load %arg3[%c0_22, %c0_23] : memref<4x49xf32, #tpu.memory_space<vmem>>, vector<4x1xf32>
    %61 = vector.broadcast %60 : vector<4x1xf32> to vector<4x256xf32>
    %62 = arith.mulf %61, %36 : vector<4x256xf32>
    %c0_24 = arith.constant 0 : index
    %c1_25 = arith.constant 1 : index
    %63 = vector.load %arg3[%c0_24, %c1_25] : memref<4x49xf32, #tpu.memory_space<vmem>>, vector<4x1xf32>
    %64 = vector.broadcast %63 : vector<4x1xf32> to vector<4x256xf32>
    %65 = arith.mulf %64, %40 : vector<4x256xf32>
    %c0_26 = arith.constant 0 : index
    %c2_27 = arith.constant 2 : index
    %66 = vector.load %arg3[%c0_26, %c2_27] : memref<4x49xf32, #tpu.memory_space<vmem>>, vector<4x1xf32>
    %67 = vector.broadcast %66 : vector<4x1xf32> to vector<4x256xf32>
    %68 = arith.mulf %67, %44 : vector<4x256xf32>
    %c0_28 = arith.constant 0 : index
    %c3_29 = arith.constant 3 : index
    %69 = vector.load %arg3[%c0_28, %c3_29] : memref<4x49xf32, #tpu.memory_space<vmem>>, vector<4x1xf32>
    %70 = vector.broadcast %69 : vector<4x1xf32> to vector<4x256xf32>
    %71 = arith.mulf %70, %47 : vector<4x256xf32>
    %c0_30 = arith.constant 0 : index
    %c4_31 = arith.constant 4 : index
    %72 = vector.load %arg3[%c0_30, %c4_31] : memref<4x49xf32, #tpu.memory_space<vmem>>, vector<4x1xf32>
    %73 = vector.broadcast %72 : vector<4x1xf32> to vector<4x256xf32>
    %74 = arith.mulf %73, %51 : vector<4x256xf32>
    %c0_32 = arith.constant 0 : index
    %c5_33 = arith.constant 5 : index
    %75 = vector.load %arg3[%c0_32, %c5_33] : memref<4x49xf32, #tpu.memory_space<vmem>>, vector<4x1xf32>
    %76 = vector.broadcast %75 : vector<4x1xf32> to vector<4x256xf32>
    %77 = arith.mulf %76, %55 : vector<4x256xf32>
    %c0_34 = arith.constant 0 : index
    %c6_35 = arith.constant 6 : index
    %78 = vector.load %arg3[%c0_34, %c6_35] : memref<4x49xf32, #tpu.memory_space<vmem>>, vector<4x1xf32>
    %79 = vector.broadcast %78 : vector<4x1xf32> to vector<4x256xf32>
    %80 = arith.mulf %79, %59 : vector<4x256xf32>
    %81 = arith.addf %62, %65 : vector<4x256xf32>
    %82 = arith.addf %68, %71 : vector<4x256xf32>
    %83 = arith.addf %74, %77 : vector<4x256xf32>
    %84 = arith.addf %81, %82 : vector<4x256xf32>
    %85 = arith.addf %83, %80 : vector<4x256xf32>
    %86 = arith.addf %84, %85 : vector<4x256xf32>
    %c48_i32 = arith.constant 48 : i32
    %87 = tpu.dynamic_rotate %86 by %c48_i32 dim 1 : vector<4x256xf32>, i32 -> vector<4x256xf32>
    %c0_36 = arith.constant 0 : index
    %c0_37 = arith.constant 0 : index
    %88 = vector.load %arg5[%c0_36, %c0_37] : memref<7x256xf32, #tpu.memory_space<vmem>>, vector<1x256xf32>
    %89 = vector.broadcast %88 : vector<1x256xf32> to vector<4x256xf32>
    %90 = arith.mulf %87, %89 : vector<4x256xf32>
    %c0_38 = arith.constant 0 : index
    %c7 = arith.constant 7 : index
    %91 = vector.load %arg3[%c0_38, %c7] : memref<4x49xf32, #tpu.memory_space<vmem>>, vector<4x1xf32>
    %92 = vector.broadcast %91 : vector<4x1xf32> to vector<4x256xf32>
    %93 = arith.mulf %92, %36 : vector<4x256xf32>
    %c0_39 = arith.constant 0 : index
    %c8 = arith.constant 8 : index
    %94 = vector.load %arg3[%c0_39, %c8] : memref<4x49xf32, #tpu.memory_space<vmem>>, vector<4x1xf32>
    %95 = vector.broadcast %94 : vector<4x1xf32> to vector<4x256xf32>
    %96 = arith.mulf %95, %40 : vector<4x256xf32>
    %c0_40 = arith.constant 0 : index
    %c9 = arith.constant 9 : index
    %97 = vector.load %arg3[%c0_40, %c9] : memref<4x49xf32, #tpu.memory_space<vmem>>, vector<4x1xf32>
    %98 = vector.broadcast %97 : vector<4x1xf32> to vector<4x256xf32>
    %99 = arith.mulf %98, %44 : vector<4x256xf32>
    %c0_41 = arith.constant 0 : index
    %c10 = arith.constant 10 : index
    %100 = vector.load %arg3[%c0_41, %c10] : memref<4x49xf32, #tpu.memory_space<vmem>>, vector<4x1xf32>
    %101 = vector.broadcast %100 : vector<4x1xf32> to vector<4x256xf32>
    %102 = arith.mulf %101, %47 : vector<4x256xf32>
    %c0_42 = arith.constant 0 : index
    %c11 = arith.constant 11 : index
    %103 = vector.load %arg3[%c0_42, %c11] : memref<4x49xf32, #tpu.memory_space<vmem>>, vector<4x1xf32>
    %104 = vector.broadcast %103 : vector<4x1xf32> to vector<4x256xf32>
    %105 = arith.mulf %104, %51 : vector<4x256xf32>
    %c0_43 = arith.constant 0 : index
    %c12 = arith.constant 12 : index
    %106 = vector.load %arg3[%c0_43, %c12] : memref<4x49xf32, #tpu.memory_space<vmem>>, vector<4x1xf32>
    %107 = vector.broadcast %106 : vector<4x1xf32> to vector<4x256xf32>
    %108 = arith.mulf %107, %55 : vector<4x256xf32>
    %c0_44 = arith.constant 0 : index
    %c13 = arith.constant 13 : index
    %109 = vector.load %arg3[%c0_44, %c13] : memref<4x49xf32, #tpu.memory_space<vmem>>, vector<4x1xf32>
    %110 = vector.broadcast %109 : vector<4x1xf32> to vector<4x256xf32>
    %111 = arith.mulf %110, %59 : vector<4x256xf32>
    %112 = arith.addf %93, %96 : vector<4x256xf32>
    %113 = arith.addf %99, %102 : vector<4x256xf32>
    %114 = arith.addf %105, %108 : vector<4x256xf32>
    %115 = arith.addf %112, %113 : vector<4x256xf32>
    %116 = arith.addf %114, %111 : vector<4x256xf32>
    %117 = arith.addf %115, %116 : vector<4x256xf32>
    %c32_i32 = arith.constant 32 : i32
    %118 = tpu.dynamic_rotate %117 by %c32_i32 dim 1 : vector<4x256xf32>, i32 -> vector<4x256xf32>
    %c1_45 = arith.constant 1 : index
    %c0_46 = arith.constant 0 : index
    %119 = vector.load %arg5[%c1_45, %c0_46] : memref<7x256xf32, #tpu.memory_space<vmem>>, vector<1x256xf32>
    %120 = vector.broadcast %119 : vector<1x256xf32> to vector<4x256xf32>
    %121 = arith.mulf %118, %120 : vector<4x256xf32>
    %c0_47 = arith.constant 0 : index
    %c14 = arith.constant 14 : index
    %122 = vector.load %arg3[%c0_47, %c14] : memref<4x49xf32, #tpu.memory_space<vmem>>, vector<4x1xf32>
    %123 = vector.broadcast %122 : vector<4x1xf32> to vector<4x256xf32>
    %124 = arith.mulf %123, %36 : vector<4x256xf32>
    %c0_48 = arith.constant 0 : index
    %c15 = arith.constant 15 : index
    %125 = vector.load %arg3[%c0_48, %c15] : memref<4x49xf32, #tpu.memory_space<vmem>>, vector<4x1xf32>
    %126 = vector.broadcast %125 : vector<4x1xf32> to vector<4x256xf32>
    %127 = arith.mulf %126, %40 : vector<4x256xf32>
    %c0_49 = arith.constant 0 : index
    %c16 = arith.constant 16 : index
    %128 = vector.load %arg3[%c0_49, %c16] : memref<4x49xf32, #tpu.memory_space<vmem>>, vector<4x1xf32>
    %129 = vector.broadcast %128 : vector<4x1xf32> to vector<4x256xf32>
    %130 = arith.mulf %129, %44 : vector<4x256xf32>
    %c0_50 = arith.constant 0 : index
    %c17 = arith.constant 17 : index
    %131 = vector.load %arg3[%c0_50, %c17] : memref<4x49xf32, #tpu.memory_space<vmem>>, vector<4x1xf32>
    %132 = vector.broadcast %131 : vector<4x1xf32> to vector<4x256xf32>
    %133 = arith.mulf %132, %47 : vector<4x256xf32>
    %c0_51 = arith.constant 0 : index
    %c18 = arith.constant 18 : index
    %134 = vector.load %arg3[%c0_51, %c18] : memref<4x49xf32, #tpu.memory_space<vmem>>, vector<4x1xf32>
    %135 = vector.broadcast %134 : vector<4x1xf32> to vector<4x256xf32>
    %136 = arith.mulf %135, %51 : vector<4x256xf32>
    %c0_52 = arith.constant 0 : index
    %c19 = arith.constant 19 : index
    %137 = vector.load %arg3[%c0_52, %c19] : memref<4x49xf32, #tpu.memory_space<vmem>>, vector<4x1xf32>
    %138 = vector.broadcast %137 : vector<4x1xf32> to vector<4x256xf32>
    %139 = arith.mulf %138, %55 : vector<4x256xf32>
    %c0_53 = arith.constant 0 : index
    %c20 = arith.constant 20 : index
    %140 = vector.load %arg3[%c0_53, %c20] : memref<4x49xf32, #tpu.memory_space<vmem>>, vector<4x1xf32>
    %141 = vector.broadcast %140 : vector<4x1xf32> to vector<4x256xf32>
    %142 = arith.mulf %141, %59 : vector<4x256xf32>
    %143 = arith.addf %124, %127 : vector<4x256xf32>
    %144 = arith.addf %130, %133 : vector<4x256xf32>
    %145 = arith.addf %136, %139 : vector<4x256xf32>
    %146 = arith.addf %143, %144 : vector<4x256xf32>
    %147 = arith.addf %145, %142 : vector<4x256xf32>
    %148 = arith.addf %146, %147 : vector<4x256xf32>
    %c16_i32 = arith.constant 16 : i32
    %149 = tpu.dynamic_rotate %148 by %c16_i32 dim 1 : vector<4x256xf32>, i32 -> vector<4x256xf32>
    %c2_54 = arith.constant 2 : index
    %c0_55 = arith.constant 0 : index
    %150 = vector.load %arg5[%c2_54, %c0_55] : memref<7x256xf32, #tpu.memory_space<vmem>>, vector<1x256xf32>
    %151 = vector.broadcast %150 : vector<1x256xf32> to vector<4x256xf32>
    %152 = arith.mulf %149, %151 : vector<4x256xf32>
    %c0_56 = arith.constant 0 : index
    %c21 = arith.constant 21 : index
    %153 = vector.load %arg3[%c0_56, %c21] : memref<4x49xf32, #tpu.memory_space<vmem>>, vector<4x1xf32>
    %154 = vector.broadcast %153 : vector<4x1xf32> to vector<4x256xf32>
    %155 = arith.mulf %154, %36 : vector<4x256xf32>
    %c0_57 = arith.constant 0 : index
    %c22 = arith.constant 22 : index
    %156 = vector.load %arg3[%c0_57, %c22] : memref<4x49xf32, #tpu.memory_space<vmem>>, vector<4x1xf32>
    %157 = vector.broadcast %156 : vector<4x1xf32> to vector<4x256xf32>
    %158 = arith.mulf %157, %40 : vector<4x256xf32>
    %c0_58 = arith.constant 0 : index
    %c23 = arith.constant 23 : index
    %159 = vector.load %arg3[%c0_58, %c23] : memref<4x49xf32, #tpu.memory_space<vmem>>, vector<4x1xf32>
    %160 = vector.broadcast %159 : vector<4x1xf32> to vector<4x256xf32>
    %161 = arith.mulf %160, %44 : vector<4x256xf32>
    %c0_59 = arith.constant 0 : index
    %c24 = arith.constant 24 : index
    %162 = vector.load %arg3[%c0_59, %c24] : memref<4x49xf32, #tpu.memory_space<vmem>>, vector<4x1xf32>
    %163 = vector.broadcast %162 : vector<4x1xf32> to vector<4x256xf32>
    %164 = arith.mulf %163, %47 : vector<4x256xf32>
    %c0_60 = arith.constant 0 : index
    %c25 = arith.constant 25 : index
    %165 = vector.load %arg3[%c0_60, %c25] : memref<4x49xf32, #tpu.memory_space<vmem>>, vector<4x1xf32>
    %166 = vector.broadcast %165 : vector<4x1xf32> to vector<4x256xf32>
    %167 = arith.mulf %166, %51 : vector<4x256xf32>
    %c0_61 = arith.constant 0 : index
    %c26 = arith.constant 26 : index
    %168 = vector.load %arg3[%c0_61, %c26] : memref<4x49xf32, #tpu.memory_space<vmem>>, vector<4x1xf32>
    %169 = vector.broadcast %168 : vector<4x1xf32> to vector<4x256xf32>
    %170 = arith.mulf %169, %55 : vector<4x256xf32>
    %c0_62 = arith.constant 0 : index
    %c27 = arith.constant 27 : index
    %171 = vector.load %arg3[%c0_62, %c27] : memref<4x49xf32, #tpu.memory_space<vmem>>, vector<4x1xf32>
    %172 = vector.broadcast %171 : vector<4x1xf32> to vector<4x256xf32>
    %173 = arith.mulf %172, %59 : vector<4x256xf32>
    %174 = arith.addf %155, %158 : vector<4x256xf32>
    %175 = arith.addf %161, %164 : vector<4x256xf32>
    %176 = arith.addf %167, %170 : vector<4x256xf32>
    %177 = arith.addf %174, %175 : vector<4x256xf32>
    %178 = arith.addf %176, %173 : vector<4x256xf32>
    %179 = arith.addf %177, %178 : vector<4x256xf32>
    %c3_63 = arith.constant 3 : index
    %c0_64 = arith.constant 0 : index
    %180 = vector.load %arg5[%c3_63, %c0_64] : memref<7x256xf32, #tpu.memory_space<vmem>>, vector<1x256xf32>
    %181 = vector.broadcast %180 : vector<1x256xf32> to vector<4x256xf32>
    %182 = arith.mulf %179, %181 : vector<4x256xf32>
    %c0_65 = arith.constant 0 : index
    %c28 = arith.constant 28 : index
    %183 = vector.load %arg3[%c0_65, %c28] : memref<4x49xf32, #tpu.memory_space<vmem>>, vector<4x1xf32>
    %184 = vector.broadcast %183 : vector<4x1xf32> to vector<4x256xf32>
    %185 = arith.mulf %184, %36 : vector<4x256xf32>
    %c0_66 = arith.constant 0 : index
    %c29 = arith.constant 29 : index
    %186 = vector.load %arg3[%c0_66, %c29] : memref<4x49xf32, #tpu.memory_space<vmem>>, vector<4x1xf32>
    %187 = vector.broadcast %186 : vector<4x1xf32> to vector<4x256xf32>
    %188 = arith.mulf %187, %40 : vector<4x256xf32>
    %c0_67 = arith.constant 0 : index
    %c30 = arith.constant 30 : index
    %189 = vector.load %arg3[%c0_67, %c30] : memref<4x49xf32, #tpu.memory_space<vmem>>, vector<4x1xf32>
    %190 = vector.broadcast %189 : vector<4x1xf32> to vector<4x256xf32>
    %191 = arith.mulf %190, %44 : vector<4x256xf32>
    %c0_68 = arith.constant 0 : index
    %c31 = arith.constant 31 : index
    %192 = vector.load %arg3[%c0_68, %c31] : memref<4x49xf32, #tpu.memory_space<vmem>>, vector<4x1xf32>
    %193 = vector.broadcast %192 : vector<4x1xf32> to vector<4x256xf32>
    %194 = arith.mulf %193, %47 : vector<4x256xf32>
    %c0_69 = arith.constant 0 : index
    %c32 = arith.constant 32 : index
    %195 = vector.load %arg3[%c0_69, %c32] : memref<4x49xf32, #tpu.memory_space<vmem>>, vector<4x1xf32>
    %196 = vector.broadcast %195 : vector<4x1xf32> to vector<4x256xf32>
    %197 = arith.mulf %196, %51 : vector<4x256xf32>
    %c0_70 = arith.constant 0 : index
    %c33 = arith.constant 33 : index
    %198 = vector.load %arg3[%c0_70, %c33] : memref<4x49xf32, #tpu.memory_space<vmem>>, vector<4x1xf32>
    %199 = vector.broadcast %198 : vector<4x1xf32> to vector<4x256xf32>
    %200 = arith.mulf %199, %55 : vector<4x256xf32>
    %c0_71 = arith.constant 0 : index
    %c34 = arith.constant 34 : index
    %201 = vector.load %arg3[%c0_71, %c34] : memref<4x49xf32, #tpu.memory_space<vmem>>, vector<4x1xf32>
    %202 = vector.broadcast %201 : vector<4x1xf32> to vector<4x256xf32>
    %203 = arith.mulf %202, %59 : vector<4x256xf32>
    %204 = arith.addf %185, %188 : vector<4x256xf32>
    %205 = arith.addf %191, %194 : vector<4x256xf32>
    %206 = arith.addf %197, %200 : vector<4x256xf32>
    %207 = arith.addf %204, %205 : vector<4x256xf32>
    %208 = arith.addf %206, %203 : vector<4x256xf32>
    %209 = arith.addf %207, %208 : vector<4x256xf32>
    %c240_i32 = arith.constant 240 : i32
    %210 = tpu.dynamic_rotate %209 by %c240_i32 dim 1 : vector<4x256xf32>, i32 -> vector<4x256xf32>
    %c4_72 = arith.constant 4 : index
    %c0_73 = arith.constant 0 : index
    %211 = vector.load %arg5[%c4_72, %c0_73] : memref<7x256xf32, #tpu.memory_space<vmem>>, vector<1x256xf32>
    %212 = vector.broadcast %211 : vector<1x256xf32> to vector<4x256xf32>
    %213 = arith.mulf %210, %212 : vector<4x256xf32>
    %c0_74 = arith.constant 0 : index
    %c35 = arith.constant 35 : index
    %214 = vector.load %arg3[%c0_74, %c35] : memref<4x49xf32, #tpu.memory_space<vmem>>, vector<4x1xf32>
    %215 = vector.broadcast %214 : vector<4x1xf32> to vector<4x256xf32>
    %216 = arith.mulf %215, %36 : vector<4x256xf32>
    %c0_75 = arith.constant 0 : index
    %c36 = arith.constant 36 : index
    %217 = vector.load %arg3[%c0_75, %c36] : memref<4x49xf32, #tpu.memory_space<vmem>>, vector<4x1xf32>
    %218 = vector.broadcast %217 : vector<4x1xf32> to vector<4x256xf32>
    %219 = arith.mulf %218, %40 : vector<4x256xf32>
    %c0_76 = arith.constant 0 : index
    %c37 = arith.constant 37 : index
    %220 = vector.load %arg3[%c0_76, %c37] : memref<4x49xf32, #tpu.memory_space<vmem>>, vector<4x1xf32>
    %221 = vector.broadcast %220 : vector<4x1xf32> to vector<4x256xf32>
    %222 = arith.mulf %221, %44 : vector<4x256xf32>
    %c0_77 = arith.constant 0 : index
    %c38 = arith.constant 38 : index
    %223 = vector.load %arg3[%c0_77, %c38] : memref<4x49xf32, #tpu.memory_space<vmem>>, vector<4x1xf32>
    %224 = vector.broadcast %223 : vector<4x1xf32> to vector<4x256xf32>
    %225 = arith.mulf %224, %47 : vector<4x256xf32>
    %c0_78 = arith.constant 0 : index
    %c39 = arith.constant 39 : index
    %226 = vector.load %arg3[%c0_78, %c39] : memref<4x49xf32, #tpu.memory_space<vmem>>, vector<4x1xf32>
    %227 = vector.broadcast %226 : vector<4x1xf32> to vector<4x256xf32>
    %228 = arith.mulf %227, %51 : vector<4x256xf32>
    %c0_79 = arith.constant 0 : index
    %c40 = arith.constant 40 : index
    %229 = vector.load %arg3[%c0_79, %c40] : memref<4x49xf32, #tpu.memory_space<vmem>>, vector<4x1xf32>
    %230 = vector.broadcast %229 : vector<4x1xf32> to vector<4x256xf32>
    %231 = arith.mulf %230, %55 : vector<4x256xf32>
    %c0_80 = arith.constant 0 : index
    %c41 = arith.constant 41 : index
    %232 = vector.load %arg3[%c0_80, %c41] : memref<4x49xf32, #tpu.memory_space<vmem>>, vector<4x1xf32>
    %233 = vector.broadcast %232 : vector<4x1xf32> to vector<4x256xf32>
    %234 = arith.mulf %233, %59 : vector<4x256xf32>
    %235 = arith.addf %216, %219 : vector<4x256xf32>
    %236 = arith.addf %222, %225 : vector<4x256xf32>
    %237 = arith.addf %228, %231 : vector<4x256xf32>
    %238 = arith.addf %235, %236 : vector<4x256xf32>
    %239 = arith.addf %237, %234 : vector<4x256xf32>
    %240 = arith.addf %238, %239 : vector<4x256xf32>
    %c224_i32 = arith.constant 224 : i32
    %241 = tpu.dynamic_rotate %240 by %c224_i32 dim 1 : vector<4x256xf32>, i32 -> vector<4x256xf32>
    %c5_81 = arith.constant 5 : index
    %c0_82 = arith.constant 0 : index
    %242 = vector.load %arg5[%c5_81, %c0_82] : memref<7x256xf32, #tpu.memory_space<vmem>>, vector<1x256xf32>
    %243 = vector.broadcast %242 : vector<1x256xf32> to vector<4x256xf32>
    %244 = arith.mulf %241, %243 : vector<4x256xf32>
    %c0_83 = arith.constant 0 : index
    %c42 = arith.constant 42 : index
    %245 = vector.load %arg3[%c0_83, %c42] : memref<4x49xf32, #tpu.memory_space<vmem>>, vector<4x1xf32>
    %246 = vector.broadcast %245 : vector<4x1xf32> to vector<4x256xf32>
    %247 = arith.mulf %246, %36 : vector<4x256xf32>
    %c0_84 = arith.constant 0 : index
    %c43 = arith.constant 43 : index
    %248 = vector.load %arg3[%c0_84, %c43] : memref<4x49xf32, #tpu.memory_space<vmem>>, vector<4x1xf32>
    %249 = vector.broadcast %248 : vector<4x1xf32> to vector<4x256xf32>
    %250 = arith.mulf %249, %40 : vector<4x256xf32>
    %c0_85 = arith.constant 0 : index
    %c44 = arith.constant 44 : index
    %251 = vector.load %arg3[%c0_85, %c44] : memref<4x49xf32, #tpu.memory_space<vmem>>, vector<4x1xf32>
    %252 = vector.broadcast %251 : vector<4x1xf32> to vector<4x256xf32>
    %253 = arith.mulf %252, %44 : vector<4x256xf32>
    %c0_86 = arith.constant 0 : index
    %c45 = arith.constant 45 : index
    %254 = vector.load %arg3[%c0_86, %c45] : memref<4x49xf32, #tpu.memory_space<vmem>>, vector<4x1xf32>
    %255 = vector.broadcast %254 : vector<4x1xf32> to vector<4x256xf32>
    %256 = arith.mulf %255, %47 : vector<4x256xf32>
    %c0_87 = arith.constant 0 : index
    %c46 = arith.constant 46 : index
    %257 = vector.load %arg3[%c0_87, %c46] : memref<4x49xf32, #tpu.memory_space<vmem>>, vector<4x1xf32>
    %258 = vector.broadcast %257 : vector<4x1xf32> to vector<4x256xf32>
    %259 = arith.mulf %258, %51 : vector<4x256xf32>
    %c0_88 = arith.constant 0 : index
    %c47 = arith.constant 47 : index
    %260 = vector.load %arg3[%c0_88, %c47] : memref<4x49xf32, #tpu.memory_space<vmem>>, vector<4x1xf32>
    %261 = vector.broadcast %260 : vector<4x1xf32> to vector<4x256xf32>
    %262 = arith.mulf %261, %55 : vector<4x256xf32>
    %c0_89 = arith.constant 0 : index
    %c48 = arith.constant 48 : index
    %263 = vector.load %arg3[%c0_89, %c48] : memref<4x49xf32, #tpu.memory_space<vmem>>, vector<4x1xf32>
    %264 = vector.broadcast %263 : vector<4x1xf32> to vector<4x256xf32>
    %265 = arith.mulf %264, %59 : vector<4x256xf32>
    %266 = arith.addf %247, %250 : vector<4x256xf32>
    %267 = arith.addf %253, %256 : vector<4x256xf32>
    %268 = arith.addf %259, %262 : vector<4x256xf32>
    %269 = arith.addf %266, %267 : vector<4x256xf32>
    %270 = arith.addf %268, %265 : vector<4x256xf32>
    %271 = arith.addf %269, %270 : vector<4x256xf32>
    %c208_i32 = arith.constant 208 : i32
    %272 = tpu.dynamic_rotate %271 by %c208_i32 dim 1 : vector<4x256xf32>, i32 -> vector<4x256xf32>
    %c6_90 = arith.constant 6 : index
    %c0_91 = arith.constant 0 : index
    %273 = vector.load %arg5[%c6_90, %c0_91] : memref<7x256xf32, #tpu.memory_space<vmem>>, vector<1x256xf32>
    %274 = vector.broadcast %273 : vector<1x256xf32> to vector<4x256xf32>
    %275 = arith.mulf %272, %274 : vector<4x256xf32>
    %276 = arith.addf %90, %121 : vector<4x256xf32>
    %277 = arith.addf %152, %182 : vector<4x256xf32>
    %278 = arith.addf %213, %244 : vector<4x256xf32>
    %279 = arith.addf %276, %277 : vector<4x256xf32>
    %280 = arith.addf %278, %275 : vector<4x256xf32>
    %281 = arith.addf %279, %280 : vector<4x256xf32>
    %282 = vector.extract_strided_slice %281 {offsets = [0, 0], sizes = [2, 256], strides = [1, 1]} : vector<4x256xf32> to vector<2x256xf32>
    %283 = vector.extract_strided_slice %281 {offsets = [2, 0], sizes = [2, 256], strides = [1, 1]} : vector<4x256xf32> to vector<2x256xf32>
    %284 = arith.addf %282, %283 : vector<2x256xf32>
    %285 = arith.negf %284 : vector<2x256xf32>
    %286 = math.exp %285 : vector<2x256xf32>
    %cst_92 = arith.constant 1.000000e+00 : f32
    %287 = vector.broadcast %cst_92 : f32 to vector<2x256xf32>
    %288 = arith.addf %287, %286 : vector<2x256xf32>
    %289 = arith.divf %287, %288 : vector<2x256xf32>
    %290 = vector.shape_cast %289 : vector<2x256xf32> to vector<2x1x256xf32>
    %291 = vector.broadcast %290 : vector<2x1x256xf32> to vector<2x32x256xf32>
    %292 = arith.mulf %27, %291 : vector<2x32x256xf32>
    %c0_93 = arith.constant 0 : index
    %c0_94 = arith.constant 0 : index
    %c0_95 = arith.constant 0 : index
    %293 = vector.load %arg6[%c0_93, %c0_94, %c0_95] : memref<2x32x256xf32, #tpu.memory_space<vmem>>, vector<2x32x256xf32>
    tpu.vector_store %arg6[%c0_93, %c0_94, %c0_95], %292 {strides = array<i32>} : memref<2x32x256xf32, #tpu.memory_space<vmem>>, vector<2x32x256xf32>,
    return
  }
}

</mosaic_0001>

<llo_original>
// kernel: testM_forward.1
$region0: #{testM_forward.1}
  #allocation0 [shape = 'u32[]', space=smem, size = 0x4, offset = 0x4, fixed_abs, tag = 'smem constant byte address 0x4 - core index']
  #allocation1 [shape = 'u32[72,128]{1,0:T(1,128)}', space=vmem, size = 0x9000, scoped, tag = 'internal scratch']
  %s0 = inlined_call_operand.vmem [shape: f32[2,32,256], index: 0, kind: input, shape index: {}]
  %s1 = inlined_call_operand.vmem [shape: f32[32,2], index: 1, kind: input, shape index: {}]
  %s2 = inlined_call_operand.vmem [shape: f32[32,2], index: 2, kind: input, shape index: {}]
  %s3 = inlined_call_operand.vmem [shape: f32[4,49], index: 3, kind: input, shape index: {}]
  %s4 = inlined_call_operand.vmem [shape: f32[7,256], index: 4, kind: input, shape index: {}]
  %s5 = inlined_call_operand.vmem [shape: f32[7,256], index: 5, kind: input, shape index: {}]
  %s6 = inlined_call_operand.vmem [shape: f32[2,32,256], index: 6, kind: output, shape index: {}]
  %s7 = sld [smem:[#allocation0]]
  $region34: #{testM_forward.1} parent=0
    _
  %s9 = ssub.s32 1, %s7
  %s10 = scalar_select 0, %s9, %s7
  // Predicated region
  $region2: #{testM_forward.1} parent=0 // pred_check
    _
  $region3: #{testM_forward.1} parent=0 // pred_check_branch
    %12 = sbr.rel (0) target = $region5
  $region4: #{testM_forward.1} parent=0 // pred_region
    _
  $region5: #{testM_forward.1} parent=0 // pred_fallthru
    _
  // Predicated region
  $region6: #{testM_forward.1} parent=0 // pred_check
    _
  $region7: #{testM_forward.1} parent=0 // pred_check_branch
    %14 = sbr.rel (0) target = $region9
  $region8: #{testM_forward.1} parent=0 // pred_region
    _
  $region9: #{testM_forward.1} parent=0 // pred_fallthru
    _
  // Predicated region
  $region10: #{testM_forward.1} parent=0 // pred_check
    _
  $region11: #{testM_forward.1} parent=0 // pred_check_branch
    %16 = sbr.rel (0) target = $region13
  $region12: #{testM_forward.1} parent=0 // pred_region
    _
  $region13: #{testM_forward.1} parent=0 // pred_fallthru
    _
  // Predicated region
  $region14: #{testM_forward.1} parent=0 // pred_check
    _
  $region15: #{testM_forward.1} parent=0 // pred_check_branch
    %18 = sbr.rel (0) target = $region17
  $region16: #{testM_forward.1} parent=0 // pred_region
    _
  $region17: #{testM_forward.1} parent=0 // pred_fallthru
    _
  // Predicated region
  $region18: #{testM_forward.1} parent=0 // pred_check
    _
  $region19: #{testM_forward.1} parent=0 // pred_check_branch
    %20 = sbr.rel (0) target = $region21
  $region20: #{testM_forward.1} parent=0 // pred_region
    _
  $region21: #{testM_forward.1} parent=0 // pred_fallthru
    _
  // Predicated region
  $region22: #{testM_forward.1} parent=0 // pred_check
    _
  $region23: #{testM_forward.1} parent=0 // pred_check_branch
    %22 = sbr.rel (0) target = $region25
  $region24: #{testM_forward.1} parent=0 // pred_region
    _
  $region25: #{testM_forward.1} parent=0 // pred_fallthru
    _
  %v23 = vld [vmem:[%s0] sm:$0xff]
  %v24 = vld [vmem:[%s0 + $0x8] sm:$0xff]
  %v25 = vld [vmem:[%s0 + $0x10] sm:$0xff]
  %v26 = vld [vmem:[%s0 + $0x18] sm:$0xff]
  %v27 = vld [vmem:[%s0 + $0x20] sm:$0xff]
  %v28 = vld [vmem:[%s0 + $0x28] sm:$0xff]
  %v29 = vld [vmem:[%s0 + $0x30] sm:$0xff]
  %v30 = vld [vmem:[%s0 + $0x38] sm:$0xff]
  %v31 = vld [vmem:[%s0 + $0x40] sm:$0xff]
  %v32 = vld [vmem:[%s0 + $0x48] sm:$0xff]
  %v33 = vld [vmem:[%s0 + $0x50] sm:$0xff]
  %v34 = vld [vmem:[%s0 + $0x58] sm:$0xff]
  %v35 = vld [vmem:[%s0 + $0x60] sm:$0xff]
  %v36 = vld [vmem:[%s0 + $0x68] sm:$0xff]
  %v37 = vld [vmem:[%s0 + $0x70] sm:$0xff]
  %v38 = vld [vmem:[%s0 + $0x78] sm:$0xff]
  %v39 = vadd.f32 %v23, %v24
  %40 = vadd.xlane.f32.xlu0 %v39
  %v41 = vpop.xlane.xlu0 %40
  %v42 = vadd.f32 %v25, %v26
  %43 = vadd.xlane.f32.xlu0 %v42
  %v44 = vpop.xlane.xlu0 %43
  %v45 = vadd.f32 %v27, %v28
  %46 = vadd.xlane.f32.xlu0 %v45
  %v47 = vpop.xlane.xlu0 %46
  %v48 = vadd.f32 %v29, %v30
  %49 = vadd.xlane.f32.xlu0 %v48
  %v50 = vpop.xlane.xlu0 %49
  %v51 = vadd.f32 %v31, %v32
  %52 = vadd.xlane.f32.xlu0 %v51
  %v53 = vpop.xlane.xlu0 %52
  %v54 = vadd.f32 %v33, %v34
  %55 = vadd.xlane.f32.xlu0 %v54
  %v56 = vpop.xlane.xlu0 %55
  %v57 = vadd.f32 %v35, %v36
  %58 = vadd.xlane.f32.xlu0 %v57
  %v59 = vpop.xlane.xlu0 %58
  %v60 = vadd.f32 %v37, %v38
  %61 = vadd.xlane.f32.xlu0 %v60
  %v62 = vpop.xlane.xlu0 %61
  %v63 = vmul.f32 %v41, 0.00390625
  %v64 = vmul.f32 %v44, 0.00390625
  %v65 = vmul.f32 %v47, 0.00390625
  %v66 = vmul.f32 %v50, 0.00390625
  %v67 = vmul.f32 %v53, 0.00390625
  %v68 = vmul.f32 %v56, 0.00390625
  %v69 = vmul.f32 %v59, 0.00390625
  %v70 = vmul.f32 %v62, 0.00390625
  %v71 = vld [vmem:[%s1] sm:$0xff]
  %v72 = vld [vmem:[%s1 + $0x8] sm:$0xff]
  %v73 = vld [vmem:[%s1 + $0x10] sm:$0xff]
  %v74 = vld [vmem:[%s1 + $0x18] sm:$0xff]
  %v75 = vmul.f32 %v71, %v63
  %v76 = vmul.f32 %v72, %v64
  %v77 = vmul.f32 %v73, %v65
  %v78 = vmul.f32 %v74, %v66
  %v79 = vmul.f32 %v71, %v67
  %v80 = vmul.f32 %v72, %v68
  %v81 = vmul.f32 %v73, %v69
  %v82 = vmul.f32 %v74, %v70
  %vm83 = vcmask 15360
  %v84 = vsel %vm83, %v75, 0.0
  %v85 = vsel %vm83, %v76, 0.0
  %v86 = vadd.f32 %v84, %v85
  %v87 = vsel %vm83, %v77, 0.0
  %v88 = vadd.f32 %v86, %v87
  %v89 = vsel %vm83, %v78, 0.0
  %v90 = vadd.f32 %v88, %v89
  %v91 = vrot.slane %v90, 4
  %v92 = vadd.f32 %v90, %v91
  %v93 = vrot.slane %v92, 2
  %v94 = vadd.f32 %v92, %v93
  %v95 = vrot.slane %v94, 1
  %v96 = vadd.f32 %v94, %v95
  %v97 = vsel %vm83, %v79, 0.0
  %v98 = vsel %vm83, %v80, 0.0
  %v99 = vadd.f32 %v97, %v98
  %v100 = vsel %vm83, %v81, 0.0
  %v101 = vadd.f32 %v99, %v100
  %v102 = vsel %vm83, %v82, 0.0
  %v103 = vadd.f32 %v101, %v102
  %v104 = vrot.slane %v103, 4
  %v105 = vadd.f32 %v103, %v104
  %v106 = vrot.slane %v105, 2
  %v107 = vadd.f32 %v105, %v106
  %v108 = vrot.slane %v107, 1
  %v109 = vadd.f32 %v107, %v108
  %v110 = vmax.f32 %v96, 0.0
  %v111 = vmax.f32 %v109, 0.0
  %v112 = vld [vmem:[%s2] sm:$0xff]
  %v113 = vld [vmem:[%s2 + $0x8] sm:$0xff]
  %v114 = vld [vmem:[%s2 + $0x10] sm:$0xff]
  %v115 = vld [vmem:[%s2 + $0x18] sm:$0xff]
  %v116 = vmul.f32 %v112, %v110
  %v117 = vmul.f32 %v113, %v110
  %v118 = vmul.f32 %v114, %v110
  %v119 = vmul.f32 %v115, %v110
  %v120 = vmul.f32 %v112, %v111
  %v121 = vmul.f32 %v113, %v111
  %v122 = vmul.f32 %v114, %v111
  %v123 = vmul.f32 %v115, %v111
  %v124 = vsel %vm83, %v116, 0.0
  %125 = vadd.xlane.f32.xlu0 %v124
  %v126 = vpop.xlane.xlu0 %125
  %v127 = vsel %vm83, %v117, 0.0
  %128 = vadd.xlane.f32.xlu0 %v127
  %v129 = vpop.xlane.xlu0 %128
  %v130 = vsel %vm83, %v118, 0.0
  %131 = vadd.xlane.f32.xlu0 %v130
  %v132 = vpop.xlane.xlu0 %131
  %v133 = vsel %vm83, %v119, 0.0
  %134 = vadd.xlane.f32.xlu0 %v133
  %v135 = vpop.xlane.xlu0 %134
  %v136 = vsel %vm83, %v120, 0.0
  %137 = vadd.xlane.f32.xlu0 %v136
  %v138 = vpop.xlane.xlu0 %137
  %v139 = vsel %vm83, %v121, 0.0
  %140 = vadd.xlane.f32.xlu0 %v139
  %v141 = vpop.xlane.xlu0 %140
  %v142 = vsel %vm83, %v122, 0.0
  %143 = vadd.xlane.f32.xlu0 %v142
  %v144 = vpop.xlane.xlu0 %143
  %v145 = vsel %vm83, %v123, 0.0
  %146 = vadd.xlane.f32.xlu0 %v145
  %v147 = vpop.xlane.xlu0 %146
  %v148 = vxor.u32 %v126, 2147483648
  %v149 = vxor.u32 %v129, 2147483648
  %v150 = vxor.u32 %v132, 2147483648
  %v151 = vxor.u32 %v135, 2147483648
  %v152 = vxor.u32 %v138, 2147483648
  %v153 = vxor.u32 %v141, 2147483648
  %v154 = vxor.u32 %v144, 2147483648
  %v155 = vxor.u32 %v147, 2147483648
  %v156 = vmul.f32 %v148, 1.442695
  %v157 = vpow.pop %v156
  %v158 = vmul.f32 %v149, 1.442695
  %v159 = vpow.pop %v158
  %v160 = vmul.f32 %v150, 1.442695
  %v161 = vpow.pop %v160
  %v162 = vmul.f32 %v151, 1.442695
  %v163 = vpow.pop %v162
  %v164 = vmul.f32 %v152, 1.442695
  %v165 = vpow.pop %v164
  %v166 = vmul.f32 %v153, 1.442695
  %v167 = vpow.pop %v166
  %v168 = vmul.f32 %v154, 1.442695
  %v169 = vpow.pop %v168
  %v170 = vmul.f32 %v155, 1.442695
  %v171 = vpow.pop %v170
  %v172 = vadd.f32 %v157, 1.0
  %v173 = vadd.f32 %v159, 1.0
  %v174 = vadd.f32 %v161, 1.0
  %v175 = vadd.f32 %v163, 1.0
  %v176 = vadd.f32 %v165, 1.0
  %v177 = vadd.f32 %v167, 1.0
  %v178 = vadd.f32 %v169, 1.0
  %v179 = vadd.f32 %v171, 1.0
  %v180 = vrcp.pop %v172
  %v181 = vmul.f32 %v172, %v180
  %v182 = vsub.f32 1.0, %v181
  %v183 = vmul.f32 %v180, %v182
  %v184 = vadd.f32 %v180, %v183
  %vm185 = vweird.f32 %v172
  %vm186 = vweird.f32 %v180
  %vm187 = vmor %vm185, %vm186
  %v188 = vsel %vm187, %v180, %v184
  %v189 = vand.u32 2147483647, %v172
  %vm190 = vcmp.eq.f32.partialorder %v189, 8.507059e+37
  %v191 = vand.u32 %v172, 2147483648
  %v192 = vor.u32 1.1754944e-38, %v191
  %v193 = vsel %vm190, %v192, %v188
  %v194 = vmul.f32 1.0, %v193
  %v195 = vrcp.pop %v173
  %v196 = vmul.f32 %v173, %v195
  %v197 = vsub.f32 1.0, %v196
  %v198 = vmul.f32 %v195, %v197
  %v199 = vadd.f32 %v195, %v198
  %vm200 = vweird.f32 %v173
  %vm201 = vweird.f32 %v195
  %vm202 = vmor %vm200, %vm201
  %v203 = vsel %vm202, %v195, %v199
  %v204 = vand.u32 2147483647, %v173
  %vm205 = vcmp.eq.f32.partialorder %v204, 8.507059e+37
  %v206 = vand.u32 %v173, 2147483648
  %v207 = vor.u32 1.1754944e-38, %v206
  %v208 = vsel %vm205, %v207, %v203
  %v209 = vmul.f32 1.0, %v208
  %v210 = vrcp.pop %v174
  %v211 = vmul.f32 %v174, %v210
  %v212 = vsub.f32 1.0, %v211
  %v213 = vmul.f32 %v210, %v212
  %v214 = vadd.f32 %v210, %v213
  %vm215 = vweird.f32 %v174
  %vm216 = vweird.f32 %v210
  %vm217 = vmor %vm215, %vm216
  %v218 = vsel %vm217, %v210, %v214
  %v219 = vand.u32 2147483647, %v174
  %vm220 = vcmp.eq.f32.partialorder %v219, 8.507059e+37
  %v221 = vand.u32 %v174, 2147483648
  %v222 = vor.u32 1.1754944e-38, %v221
  %v223 = vsel %vm220, %v222, %v218
  %v224 = vmul.f32 1.0, %v223
  %v225 = vrcp.pop %v175
  %v226 = vmul.f32 %v175, %v225
  %v227 = vsub.f32 1.0, %v226
  %v228 = vmul.f32 %v225, %v227
  %v229 = vadd.f32 %v225, %v228
  %vm230 = vweird.f32 %v175
  %vm231 = vweird.f32 %v225
  %vm232 = vmor %vm230, %vm231
  %v233 = vsel %vm232, %v225, %v229
  %v234 = vand.u32 2147483647, %v175
  %vm235 = vcmp.eq.f32.partialorder %v234, 8.507059e+37
  %v236 = vand.u32 %v175, 2147483648
  %v237 = vor.u32 1.1754944e-38, %v236
  %v238 = vsel %vm235, %v237, %v233
  %v239 = vmul.f32 1.0, %v238
  %v240 = vrcp.pop %v176
  %v241 = vmul.f32 %v176, %v240
  %v242 = vsub.f32 1.0, %v241
  %v243 = vmul.f32 %v240, %v242
  %v244 = vadd.f32 %v240, %v243
  %vm245 = vweird.f32 %v176
  %vm246 = vweird.f32 %v240
  %vm247 = vmor %vm245, %vm246
  %v248 = vsel %vm247, %v240, %v244
  %v249 = vand.u32 2147483647, %v176
  %vm250 = vcmp.eq.f32.partialorder %v249, 8.507059e+37
  %v251 = vand.u32 %v176, 2147483648
  %v252 = vor.u32 1.1754944e-38, %v251
  %v253 = vsel %vm250, %v252, %v248
  %v254 = vmul.f32 1.0, %v253
  %v255 = vrcp.pop %v177
  %v256 = vmul.f32 %v177, %v255
  %v257 = vsub.f32 1.0, %v256
  %v258 = vmul.f32 %v255, %v257
  %v259 = vadd.f32 %v255, %v258
  %vm260 = vweird.f32 %v177
  %vm261 = vweird.f32 %v255
  %vm262 = vmor %vm260, %vm261
  %v263 = vsel %vm262, %v255, %v259
  %v264 = vand.u32 2147483647, %v177
  %vm265 = vcmp.eq.f32.partialorder %v264, 8.507059e+37
  %v266 = vand.u32 %v177, 2147483648
  %v267 = vor.u32 1.1754944e-38, %v266
  %v268 = vsel %vm265, %v267, %v263
  %v269 = vmul.f32 1.0, %v268
  %v270 = vrcp.pop %v178
  %v271 = vmul.f32 %v178, %v270
  %v272 = vsub.f32 1.0, %v271
  %v273 = vmul.f32 %v270, %v272
  %v274 = vadd.f32 %v270, %v273
  %vm275 = vweird.f32 %v178
  %vm276 = vweird.f32 %v270
  %vm277 = vmor %vm275, %vm276
  %v278 = vsel %vm277, %v270, %v274
  %v279 = vand.u32 2147483647, %v178
  %vm280 = vcmp.eq.f32.partialorder %v279, 8.507059e+37
  %v281 = vand.u32 %v178, 2147483648
  %v282 = vor.u32 1.1754944e-38, %v281
  %v283 = vsel %vm280, %v282, %v278
  %v284 = vmul.f32 1.0, %v283
  %v285 = vrcp.pop %v179
  %v286 = vmul.f32 %v179, %v285
  %v287 = vsub.f32 1.0, %v286
  %v288 = vmul.f32 %v285, %v287
  %v289 = vadd.f32 %v285, %v288
  %vm290 = vweird.f32 %v179
  %vm291 = vweird.f32 %v285
  %vm292 = vmor %vm290, %vm291
  %v293 = vsel %vm292, %v285, %v289
  %v294 = vand.u32 2147483647, %v179
  %vm295 = vcmp.eq.f32.partialorder %v294, 8.507059e+37
  %v296 = vand.u32 %v179, 2147483648
  %v297 = vor.u32 1.1754944e-38, %v296
  %v298 = vsel %vm295, %v297, %v293
  %v299 = vmul.f32 1.0, %v298
  %v300 = vmul.f32 %v23, %v194
  %v301 = vmul.f32 %v24, %v194
  %v302 = vmul.f32 %v25, %v209
  %v303 = vmul.f32 %v26, %v209
  %v304 = vmul.f32 %v27, %v224
  %v305 = vmul.f32 %v28, %v224
  %v306 = vmul.f32 %v29, %v239
  %v307 = vmul.f32 %v30, %v239
  %v308 = vmul.f32 %v31, %v254
  %v309 = vmul.f32 %v32, %v254
  %v310 = vmul.f32 %v33, %v269
  %v311 = vmul.f32 %v34, %v269
  %v312 = vmul.f32 %v35, %v284
  %v313 = vmul.f32 %v36, %v284
  %v314 = vmul.f32 %v37, %v299
  %v315 = vmul.f32 %v38, %v299
  %v316 = vadd.f32 %v300, %v302
  %v317 = vadd.f32 %v316, %v304
  %v318 = vadd.f32 %v317, %v306
  %v319 = vrot.slane %v318, 4
  %v320 = vadd.f32 %v318, %v319
  %v321 = vrot.slane %v320, 2
  %v322 = vadd.f32 %v320, %v321
  %v323 = vrot.slane %v322, 1
  %v324 = vadd.f32 %v322, %v323
  %v325 = vadd.f32 %v301, %v303
  %v326 = vadd.f32 %v325, %v305
  %v327 = vadd.f32 %v326, %v307
  %v328 = vrot.slane %v327, 4
  %v329 = vadd.f32 %v327, %v328
  %v330 = vrot.slane %v329, 2
  %v331 = vadd.f32 %v329, %v330
  %v332 = vrot.slane %v331, 1
  %v333 = vadd.f32 %v331, %v332
  %v334 = vadd.f32 %v308, %v310
  %v335 = vadd.f32 %v334, %v312
  %v336 = vadd.f32 %v335, %v314
  %v337 = vrot.slane %v336, 4
  %v338 = vadd.f32 %v336, %v337
  %v339 = vrot.slane %v338, 2
  %v340 = vadd.f32 %v338, %v339
  %v341 = vrot.slane %v340, 1
  %v342 = vadd.f32 %v340, %v341
  %v343 = vadd.f32 %v309, %v311
  %v344 = vadd.f32 %v343, %v313
  %v345 = vadd.f32 %v344, %v315
  %v346 = vrot.slane %v345, 4
  %v347 = vadd.f32 %v345, %v346
  %v348 = vrot.slane %v347, 2
  %v349 = vadd.f32 %v347, %v348
  %v350 = vrot.slane %v349, 1
  %v351 = vadd.f32 %v349, %v350
  %v352 = vrcp.pop 32.0
  %v353 = vmul.f32 32.0, %v352
  %v354 = vsub.f32 1.0, %v353
  %v355 = vmul.f32 %v352, %v354
  %v356 = vadd.f32 %v352, %v355
  %vm357 = vweird.f32 %v352
  %v358 = vsel %vm357, %v352, %v356
  %v359 = vmul.f32 %v324, %v358
  %v360 = vmul.f32 %v333, %v358
  %v361 = vmul.f32 %v342, %v358
  %v362 = vmul.f32 %v351, %v358
  %v363 = vmax.f32 %v300, %v302
  %v364 = vmax.f32 %v363, %v304
  %v365 = vmax.f32 %v364, %v306
  %v366 = vrot.slane %v365, 4
  %v367 = vmax.f32 %v365, %v366
  %v368 = vrot.slane %v367, 2
  %v369 = vmax.f32 %v367, %v368
  %v370 = vrot.slane %v369, 1
  %v371 = vmax.f32 %v369, %v370
  %v372 = vmax.f32 %v301, %v303
  %v373 = vmax.f32 %v372, %v305
  %v374 = vmax.f32 %v373, %v307
  %v375 = vrot.slane %v374, 4
  %v376 = vmax.f32 %v374, %v375
  %v377 = vrot.slane %v376, 2
  %v378 = vmax.f32 %v376, %v377
  %v379 = vrot.slane %v378, 1
  %v380 = vmax.f32 %v378, %v379
  %v381 = vmax.f32 %v308, %v310
  %v382 = vmax.f32 %v381, %v312
  %v383 = vmax.f32 %v382, %v314
  %v384 = vrot.slane %v383, 4
  %v385 = vmax.f32 %v383, %v384
  %v386 = vrot.slane %v385, 2
  %v387 = vmax.f32 %v385, %v386
  %v388 = vrot.slane %v387, 1
  %v389 = vmax.f32 %v387, %v388
  %v390 = vmax.f32 %v309, %v311
  %v391 = vmax.f32 %v390, %v313
  %v392 = vmax.f32 %v391, %v315
  %v393 = vrot.slane %v392, 4
  %v394 = vmax.f32 %v392, %v393
  %v395 = vrot.slane %v394, 2
  %v396 = vmax.f32 %v394, %v395
  %v397 = vrot.slane %v396, 1
  %v398 = vmax.f32 %v396, %v397
  %vm403 = vcmask 1041409
  %v404 = vsel %vm403, %v361, %v359
  %v405 = vsel %vm403, %v362, %v360
  %vm412 = vcmask 1043459
  %v413 = vsel %vm412, %v389, %v371
  %v414 = vsel %vm412, %v398, %v380
  %vm417 = vcmask 1041408
  %v418 = vsel %vm417, %v404, %v413
  %v419 = vsel %vm417, %v405, %v414
  %420 = vrot.lane.b32.xlu0 %v418, 3
  %v421 = vpop.permute.xlu0 %420
  %422 = vrot.lane.b32.xlu0 %v419, 3
  %v423 = vpop.permute.xlu0 %422
  %v424 = vlaneseq
  %v425 = vand.u32 %v424, 127
  %vm426 = vcmp.lt.s32.totalorder %v425, 3
  %v427 = vsel %vm426, %v421, %v423
  %v428 = vsel %vm426, %v423, %v421
  %v429 = vld [vmem:[%s4] ss:$8 sm:$0x3]
  %v431 = vperm.slane %v429, 0
  %v432 = vperm.slane %v429, 1
  %v435 = vmul.f32 %v428, %v431
  %v436 = vmul.f32 %v427, %v432
  %437 = vrot.lane.b32.xlu0 %v418, 2
  %v438 = vpop.permute.xlu0 %437
  %439 = vrot.lane.b32.xlu0 %v419, 2
  %v440 = vpop.permute.xlu0 %439
  %vm441 = vcmp.lt.s32.totalorder %v425, 2
  %v442 = vsel %vm441, %v438, %v440
  %v443 = vsel %vm441, %v440, %v438
  %s444 = scalar_lea.vmem %s4, 1
  %v445 = vld [vmem:[%s444] ss:$8 sm:$0x3]
  %v447 = vperm.slane %v445, 0
  %v448 = vperm.slane %v445, 1
  %v451 = vmul.f32 %v443, %v447
  %v452 = vmul.f32 %v442, %v448
  %453 = vrot.lane.b32.xlu0 %v418, 1
  %v454 = vpop.permute.xlu0 %453
  %455 = vrot.lane.b32.xlu0 %v419, 1
  %v456 = vpop.permute.xlu0 %455
  %vm457 = vcmp.lt.s32.totalorder %v425, 1
  %v458 = vsel %vm457, %v454, %v456
  %v459 = vsel %vm457, %v456, %v454
  %s460 = scalar_lea.vmem %s4, 2
  %v461 = vld [vmem:[%s460] ss:$8 sm:$0x3]
  %v463 = vperm.slane %v461, 0
  %v464 = vperm.slane %v461, 1
  %v467 = vmul.f32 %v459, %v463
  %v468 = vmul.f32 %v458, %v464
  %s469 = scalar_lea.vmem %s4, 3
  %v470 = vld [vmem:[%s469] ss:$8 sm:$0x3]
  %v472 = vperm.slane %v470, 0
  %v473 = vperm.slane %v470, 1
  %v476 = vmul.f32 %v418, %v472
  %v477 = vmul.f32 %v419, %v473
  %478 = vrot.lane.b32.xlu0 %v418, 127
  %v479 = vpop.permute.xlu0 %478
  %480 = vrot.lane.b32.xlu0 %v419, 127
  %v481 = vpop.permute.xlu0 %480
  %vm482 = vcmp.lt.s32.totalorder %v425, 127
  %v483 = vsel %vm482, %v479, %v481
  %v484 = vsel %vm482, %v481, %v479
  %s485 = scalar_lea.vmem %s4, 4
  %v486 = vld [vmem:[%s485] ss:$8 sm:$0x3]
  %v488 = vperm.slane %v486, 0
  %v489 = vperm.slane %v486, 1
  %v492 = vmul.f32 %v483, %v488
  %v493 = vmul.f32 %v484, %v489
  %494 = vrot.lane.b32.xlu0 %v418, 126
  %v495 = vpop.permute.xlu0 %494
  %496 = vrot.lane.b32.xlu0 %v419, 126
  %v497 = vpop.permute.xlu0 %496
  %vm498 = vcmp.lt.s32.totalorder %v425, 126
  %v499 = vsel %vm498, %v495, %v497
  %v500 = vsel %vm498, %v497, %v495
  %s501 = scalar_lea.vmem %s4, 5
  %v502 = vld [vmem:[%s501] ss:$8 sm:$0x3]
  %v504 = vperm.slane %v502, 0
  %v505 = vperm.slane %v502, 1
  %v508 = vmul.f32 %v499, %v504
  %v509 = vmul.f32 %v500, %v505
  %510 = vrot.lane.b32.xlu0 %v418, 125
  %v511 = vpop.permute.xlu0 %510
  %512 = vrot.lane.b32.xlu0 %v419, 125
  %v513 = vpop.permute.xlu0 %512
  %vm514 = vcmp.lt.s32.totalorder %v425, 125
  %v515 = vsel %vm514, %v511, %v513
  %v516 = vsel %vm514, %v513, %v511
  %s517 = scalar_lea.vmem %s4, 6
  %v518 = vld [vmem:[%s517] ss:$8 sm:$0x3]
  %v520 = vperm.slane %v518, 0
  %v521 = vperm.slane %v518, 1
  %v524 = vmul.f32 %v515, %v520
  %v525 = vmul.f32 %v516, %v521
  %v526 = vld [vmem:[%s3] sm:$0xf]
  %528 = vset.pattern.permute.xlu0 0
  %529 = vperm.xlu0 %528, %v526
  %v530 = vpop.permute.xlu0 %529
  %v532 = vmul.f32 %v530, %v435
  %v533 = vmul.f32 %v530, %v436
  %534 = vset.pattern.permute.xlu0 1
  %535 = vperm.xlu0 %534, %v526
  %v536 = vpop.permute.xlu0 %535
  %v538 = vmul.f32 %v536, %v451
  %v539 = vmul.f32 %v536, %v452
  %540 = vset.pattern.permute.xlu0 2
  %541 = vperm.xlu0 %540, %v526
  %v542 = vpop.permute.xlu0 %541
  %v544 = vmul.f32 %v542, %v467
  %v545 = vmul.f32 %v542, %v468
  %546 = vset.pattern.permute.xlu0 3
  %547 = vperm.xlu0 %546, %v526
  %v548 = vpop.permute.xlu0 %547
  %v550 = vmul.f32 %v548, %v476
  %v551 = vmul.f32 %v548, %v477
  %552 = vset.pattern.permute.xlu0 4
  %553 = vperm.xlu0 %552, %v526
  %v554 = vpop.permute.xlu0 %553
  %v556 = vmul.f32 %v554, %v492
  %v557 = vmul.f32 %v554, %v493
  %558 = vset.pattern.permute.xlu0 5
  %559 = vperm.xlu0 %558, %v526
  %v560 = vpop.permute.xlu0 %559
  %v562 = vmul.f32 %v560, %v508
  %v563 = vmul.f32 %v560, %v509
  %564 = vset.pattern.permute.xlu0 6
  %565 = vperm.xlu0 %564, %v526
  %v566 = vpop.permute.xlu0 %565
  %v568 = vmul.f32 %v566, %v524
  %v569 = vmul.f32 %v566, %v525
  %v570 = vadd.f32 %v532, %v538
  %v571 = vadd.f32 %v533, %v539
  %v572 = vadd.f32 %v544, %v550
  %v573 = vadd.f32 %v545, %v551
  %v574 = vadd.f32 %v556, %v562
  %v575 = vadd.f32 %v557, %v563
  %v576 = vadd.f32 %v570, %v572
  %v577 = vadd.f32 %v571, %v573
  %v578 = vadd.f32 %v574, %v568
  %v579 = vadd.f32 %v575, %v569
  %v580 = vadd.f32 %v576, %v578
  %v581 = vadd.f32 %v577, %v579
  %582 = vrot.lane.b32.xlu0 %v580, 48
  %v583 = vpop.permute.xlu0 %582
  %584 = vrot.lane.b32.xlu0 %v581, 48
  %v585 = vpop.permute.xlu0 %584
  %vm586 = vcmp.lt.s32.totalorder %v425, 48
  %v587 = vsel %vm586, %v583, %v585
  %v588 = vsel %vm586, %v585, %v583
  %v589 = vld [vmem:[%s5] ss:$8 sm:$0x3]
  %v591 = vperm.slane %v589, 0
  %v592 = vperm.slane %v589, 1
  %v595 = vmul.f32 %v588, %v591
  %v596 = vmul.f32 %v587, %v592
  %597 = vset.pattern.permute.xlu0 7
  %598 = vperm.xlu0 %597, %v526
  %v599 = vpop.permute.xlu0 %598
  %v601 = vmul.f32 %v599, %v435
  %v602 = vmul.f32 %v599, %v436
  %603 = vset.pattern.permute.xlu0 8
  %604 = vperm.xlu0 %603, %v526
  %v605 = vpop.permute.xlu0 %604
  %v607 = vmul.f32 %v605, %v451
  %v608 = vmul.f32 %v605, %v452
  %609 = vset.pattern.permute.xlu0 9
  %610 = vperm.xlu0 %609, %v526
  %v611 = vpop.permute.xlu0 %610
  %v613 = vmul.f32 %v611, %v467
  %v614 = vmul.f32 %v611, %v468
  %615 = vset.pattern.permute.xlu0 10
  %616 = vperm.xlu0 %615, %v526
  %v617 = vpop.permute.xlu0 %616
  %v619 = vmul.f32 %v617, %v476
  %v620 = vmul.f32 %v617, %v477
  %621 = vset.pattern.permute.xlu0 11
  %622 = vperm.xlu0 %621, %v526
  %v623 = vpop.permute.xlu0 %622
  %v625 = vmul.f32 %v623, %v492
  %v626 = vmul.f32 %v623, %v493
  %627 = vset.pattern.permute.xlu0 12
  %628 = vperm.xlu0 %627, %v526
  %v629 = vpop.permute.xlu0 %628
  %v631 = vmul.f32 %v629, %v508
  %v632 = vmul.f32 %v629, %v509
  %633 = vset.pattern.permute.xlu0 13
  %634 = vperm.xlu0 %633, %v526
  %v635 = vpop.permute.xlu0 %634
  %v637 = vmul.f32 %v635, %v524
  %v638 = vmul.f32 %v635, %v525
  %v639 = vadd.f32 %v601, %v607
  %v640 = vadd.f32 %v602, %v608
  %v641 = vadd.f32 %v613, %v619
  %v642 = vadd.f32 %v614, %v620
  %v643 = vadd.f32 %v625, %v631
  %v644 = vadd.f32 %v626, %v632
  %v645 = vadd.f32 %v639, %v641
  %v646 = vadd.f32 %v640, %v642
  %v647 = vadd.f32 %v643, %v637
  %v648 = vadd.f32 %v644, %v638
  %v649 = vadd.f32 %v645, %v647
  %v650 = vadd.f32 %v646, %v648
  %651 = vrot.lane.b32.xlu0 %v649, 32
  %v652 = vpop.permute.xlu0 %651
  %653 = vrot.lane.b32.xlu0 %v650, 32
  %v654 = vpop.permute.xlu0 %653
  %vm655 = vcmp.lt.s32.totalorder %v425, 32
  %v656 = vsel %vm655, %v652, %v654
  %v657 = vsel %vm655, %v654, %v652
  %s658 = scalar_lea.vmem %s5, 1
  %v659 = vld [vmem:[%s658] ss:$8 sm:$0x3]
  %v661 = vperm.slane %v659, 0
  %v662 = vperm.slane %v659, 1
  %v665 = vmul.f32 %v657, %v661
  %v666 = vmul.f32 %v656, %v662
  %667 = vset.pattern.permute.xlu0 14
  %668 = vperm.xlu0 %667, %v526
  %v669 = vpop.permute.xlu0 %668
  %v671 = vmul.f32 %v669, %v435
  %v672 = vmul.f32 %v669, %v436
  %673 = vset.pattern.permute.xlu0 15
  %674 = vperm.xlu0 %673, %v526
  %v675 = vpop.permute.xlu0 %674
  %v677 = vmul.f32 %v675, %v451
  %v678 = vmul.f32 %v675, %v452
  %679 = vset.pattern.permute.xlu0 16
  %680 = vperm.xlu0 %679, %v526
  %v681 = vpop.permute.xlu0 %680
  %v683 = vmul.f32 %v681, %v467
  %v684 = vmul.f32 %v681, %v468
  %685 = vset.pattern.permute.xlu0 17
  %686 = vperm.xlu0 %685, %v526
  %v687 = vpop.permute.xlu0 %686
  %v689 = vmul.f32 %v687, %v476
  %v690 = vmul.f32 %v687, %v477
  %691 = vset.pattern.permute.xlu0 18
  %692 = vperm.xlu0 %691, %v526
  %v693 = vpop.permute.xlu0 %692
  %v695 = vmul.f32 %v693, %v492
  %v696 = vmul.f32 %v693, %v493
  %697 = vset.pattern.permute.xlu0 19
  %698 = vperm.xlu0 %697, %v526
  %v699 = vpop.permute.xlu0 %698
  %v701 = vmul.f32 %v699, %v508
  %v702 = vmul.f32 %v699, %v509
  %703 = vset.pattern.permute.xlu0 20
  %704 = vperm.xlu0 %703, %v526
  %v705 = vpop.permute.xlu0 %704
  %v707 = vmul.f32 %v705, %v524
  %v708 = vmul.f32 %v705, %v525
  %v709 = vadd.f32 %v671, %v677
  %v710 = vadd.f32 %v672, %v678
  %v711 = vadd.f32 %v683, %v689
  %v712 = vadd.f32 %v684, %v690
  %v713 = vadd.f32 %v695, %v701
  %v714 = vadd.f32 %v696, %v702
  %v715 = vadd.f32 %v709, %v711
  %v716 = vadd.f32 %v710, %v712
  %v717 = vadd.f32 %v713, %v707
  %v718 = vadd.f32 %v714, %v708
  %v719 = vadd.f32 %v715, %v717
  %v720 = vadd.f32 %v716, %v718
  %721 = vrot.lane.b32.xlu0 %v719, 16
  %v722 = vpop.permute.xlu0 %721
  %723 = vrot.lane.b32.xlu0 %v720, 16
  %v724 = vpop.permute.xlu0 %723
  %vm725 = vcmp.lt.s32.totalorder %v425, 16
  %v726 = vsel %vm725, %v722, %v724
  %v727 = vsel %vm725, %v724, %v722
  %s728 = scalar_lea.vmem %s5, 2
  %v729 = vld [vmem:[%s728] ss:$8 sm:$0x3]
  %v731 = vperm.slane %v729, 0
  %v732 = vperm.slane %v729, 1
  %v735 = vmul.f32 %v727, %v731
  %v736 = vmul.f32 %v726, %v732
  %737 = vset.pattern.permute.xlu0 21
  %738 = vperm.xlu0 %737, %v526
  %v739 = vpop.permute.xlu0 %738
  %v741 = vmul.f32 %v739, %v435
  %v742 = vmul.f32 %v739, %v436
  %743 = vset.pattern.permute.xlu0 22
  %744 = vperm.xlu0 %743, %v526
  %v745 = vpop.permute.xlu0 %744
  %v747 = vmul.f32 %v745, %v451
  %v748 = vmul.f32 %v745, %v452
  %749 = vset.pattern.permute.xlu0 23
  %750 = vperm.xlu0 %749, %v526
  %v751 = vpop.permute.xlu0 %750
  %v753 = vmul.f32 %v751, %v467
  %v754 = vmul.f32 %v751, %v468
  %755 = vset.pattern.permute.xlu0 24
  %756 = vperm.xlu0 %755, %v526
  %v757 = vpop.permute.xlu0 %756
  %v759 = vmul.f32 %v757, %v476
  %v760 = vmul.f32 %v757, %v477
  %761 = vset.pattern.permute.xlu0 25
  %762 = vperm.xlu0 %761, %v526
  %v763 = vpop.permute.xlu0 %762
  %v765 = vmul.f32 %v763, %v492
  %v766 = vmul.f32 %v763, %v493
  %767 = vset.pattern.permute.xlu0 26
  %768 = vperm.xlu0 %767, %v526
  %v769 = vpop.permute.xlu0 %768
  %v771 = vmul.f32 %v769, %v508
  %v772 = vmul.f32 %v769, %v509
  %773 = vset.pattern.permute.xlu0 27
  %774 = vperm.xlu0 %773, %v526
  %v775 = vpop.permute.xlu0 %774
  %v777 = vmul.f32 %v775, %v524
  %v778 = vmul.f32 %v775, %v525
  %v779 = vadd.f32 %v741, %v747
  %v780 = vadd.f32 %v742, %v748
  %v781 = vadd.f32 %v753, %v759
  %v782 = vadd.f32 %v754, %v760
  %v783 = vadd.f32 %v765, %v771
  %v784 = vadd.f32 %v766, %v772
  %v785 = vadd.f32 %v779, %v781
  %v786 = vadd.f32 %v780, %v782
  %v787 = vadd.f32 %v783, %v777
  %v788 = vadd.f32 %v784, %v778
  %v789 = vadd.f32 %v785, %v787
  %v790 = vadd.f32 %v786, %v788
  %s791 = scalar_lea.vmem %s5, 3
  %v792 = vld [vmem:[%s791] ss:$8 sm:$0x3]
  %v794 = vperm.slane %v792, 0
  %v795 = vperm.slane %v792, 1
  %v798 = vmul.f32 %v789, %v794
  %v799 = vmul.f32 %v790, %v795
  %800 = vset.pattern.permute.xlu0 28
  %801 = vperm.xlu0 %800, %v526
  %v802 = vpop.permute.xlu0 %801
  %v804 = vmul.f32 %v802, %v435
  %v805 = vmul.f32 %v802, %v436
  %806 = vset.pattern.permute.xlu0 29
  %807 = vperm.xlu0 %806, %v526
  %v808 = vpop.permute.xlu0 %807
  %v810 = vmul.f32 %v808, %v451
  %v811 = vmul.f32 %v808, %v452
  %812 = vset.pattern.permute.xlu0 30
  %813 = vperm.xlu0 %812, %v526
  %v814 = vpop.permute.xlu0 %813
  %v816 = vmul.f32 %v814, %v467
  %v817 = vmul.f32 %v814, %v468
  %818 = vset.pattern.permute.xlu0 31
  %819 = vperm.xlu0 %818, %v526
  %v820 = vpop.permute.xlu0 %819
  %v822 = vmul.f32 %v820, %v476
  %v823 = vmul.f32 %v820, %v477
  %824 = vset.pattern.permute.xlu0 32
  %825 = vperm.xlu0 %824, %v526
  %v826 = vpop.permute.xlu0 %825
  %v828 = vmul.f32 %v826, %v492
  %v829 = vmul.f32 %v826, %v493
  %830 = vset.pattern.permute.xlu0 33
  %831 = vperm.xlu0 %830, %v526
  %v832 = vpop.permute.xlu0 %831
  %v834 = vmul.f32 %v832, %v508
  %v835 = vmul.f32 %v832, %v509
  %836 = vset.pattern.permute.xlu0 34
  %837 = vperm.xlu0 %836, %v526
  %v838 = vpop.permute.xlu0 %837
  %v840 = vmul.f32 %v838, %v524
  %v841 = vmul.f32 %v838, %v525
  %v842 = vadd.f32 %v804, %v810
  %v843 = vadd.f32 %v805, %v811
  %v844 = vadd.f32 %v816, %v822
  %v845 = vadd.f32 %v817, %v823
  %v846 = vadd.f32 %v828, %v834
  %v847 = vadd.f32 %v829, %v835
  %v848 = vadd.f32 %v842, %v844
  %v849 = vadd.f32 %v843, %v845
  %v850 = vadd.f32 %v846, %v840
  %v851 = vadd.f32 %v847, %v841
  %v852 = vadd.f32 %v848, %v850
  %v853 = vadd.f32 %v849, %v851
  %854 = vrot.lane.b32.xlu0 %v852, 112
  %v855 = vpop.permute.xlu0 %854
  %856 = vrot.lane.b32.xlu0 %v853, 112
  %v857 = vpop.permute.xlu0 %856
  %vm858 = vcmp.lt.s32.totalorder %v425, 112
  %v859 = vsel %vm858, %v855, %v857
  %v860 = vsel %vm858, %v857, %v855
  %s861 = scalar_lea.vmem %s5, 4
  %v862 = vld [vmem:[%s861] ss:$8 sm:$0x3]
  %v864 = vperm.slane %v862, 0
  %v865 = vperm.slane %v862, 1
  %v868 = vmul.f32 %v859, %v864
  %v869 = vmul.f32 %v860, %v865
  %870 = vset.pattern.permute.xlu0 35
  %871 = vperm.xlu0 %870, %v526
  %v872 = vpop.permute.xlu0 %871
  %v874 = vmul.f32 %v872, %v435
  %v875 = vmul.f32 %v872, %v436
  %876 = vset.pattern.permute.xlu0 36
  %877 = vperm.xlu0 %876, %v526
  %v878 = vpop.permute.xlu0 %877
  %v880 = vmul.f32 %v878, %v451
  %v881 = vmul.f32 %v878, %v452
  %882 = vset.pattern.permute.xlu0 37
  %883 = vperm.xlu0 %882, %v526
  %v884 = vpop.permute.xlu0 %883
  %v886 = vmul.f32 %v884, %v467
  %v887 = vmul.f32 %v884, %v468
  %888 = vset.pattern.permute.xlu0 38
  %889 = vperm.xlu0 %888, %v526
  %v890 = vpop.permute.xlu0 %889
  %v892 = vmul.f32 %v890, %v476
  %v893 = vmul.f32 %v890, %v477
  %894 = vset.pattern.permute.xlu0 39
  %895 = vperm.xlu0 %894, %v526
  %v896 = vpop.permute.xlu0 %895
  %v898 = vmul.f32 %v896, %v492
  %v899 = vmul.f32 %v896, %v493
  %900 = vset.pattern.permute.xlu0 40
  %901 = vperm.xlu0 %900, %v526
  %v902 = vpop.permute.xlu0 %901
  %v904 = vmul.f32 %v902, %v508
  %v905 = vmul.f32 %v902, %v509
  %906 = vset.pattern.permute.xlu0 41
  %907 = vperm.xlu0 %906, %v526
  %v908 = vpop.permute.xlu0 %907
  %v910 = vmul.f32 %v908, %v524
  %v911 = vmul.f32 %v908, %v525
  %v912 = vadd.f32 %v874, %v880
  %v913 = vadd.f32 %v875, %v881
  %v914 = vadd.f32 %v886, %v892
  %v915 = vadd.f32 %v887, %v893
  %v916 = vadd.f32 %v898, %v904
  %v917 = vadd.f32 %v899, %v905
  %v918 = vadd.f32 %v912, %v914
  %v919 = vadd.f32 %v913, %v915
  %v920 = vadd.f32 %v916, %v910
  %v921 = vadd.f32 %v917, %v911
  %v922 = vadd.f32 %v918, %v920
  %v923 = vadd.f32 %v919, %v921
  %924 = vrot.lane.b32.xlu0 %v922, 96
  %v925 = vpop.permute.xlu0 %924
  %926 = vrot.lane.b32.xlu0 %v923, 96
  %v927 = vpop.permute.xlu0 %926
  %vm928 = vcmp.lt.s32.totalorder %v425, 96
  %v929 = vsel %vm928, %v925, %v927
  %v930 = vsel %vm928, %v927, %v925
  %s931 = scalar_lea.vmem %s5, 5
  %v932 = vld [vmem:[%s931] ss:$8 sm:$0x3]
  %v934 = vperm.slane %v932, 0
  %v935 = vperm.slane %v932, 1
  %v938 = vmul.f32 %v929, %v934
  %v939 = vmul.f32 %v930, %v935
  %940 = vset.pattern.permute.xlu0 42
  %941 = vperm.xlu0 %940, %v526
  %v942 = vpop.permute.xlu0 %941
  %v944 = vmul.f32 %v942, %v435
  %v945 = vmul.f32 %v942, %v436
  %946 = vset.pattern.permute.xlu0 43
  %947 = vperm.xlu0 %946, %v526
  %v948 = vpop.permute.xlu0 %947
  %v950 = vmul.f32 %v948, %v451
  %v951 = vmul.f32 %v948, %v452
  %952 = vset.pattern.permute.xlu0 44
  %953 = vperm.xlu0 %952, %v526
  %v954 = vpop.permute.xlu0 %953
  %v956 = vmul.f32 %v954, %v467
  %v957 = vmul.f32 %v954, %v468
  %958 = vset.pattern.permute.xlu0 45
  %959 = vperm.xlu0 %958, %v526
  %v960 = vpop.permute.xlu0 %959
  %v962 = vmul.f32 %v960, %v476
  %v963 = vmul.f32 %v960, %v477
  %964 = vset.pattern.permute.xlu0 46
  %965 = vperm.xlu0 %964, %v526
  %v966 = vpop.permute.xlu0 %965
  %v968 = vmul.f32 %v966, %v492
  %v969 = vmul.f32 %v966, %v493
  %970 = vset.pattern.permute.xlu0 47
  %971 = vperm.xlu0 %970, %v526
  %v972 = vpop.permute.xlu0 %971
  %v974 = vmul.f32 %v972, %v508
  %v975 = vmul.f32 %v972, %v509
  %976 = vset.pattern.permute.xlu0 48
  %977 = vperm.xlu0 %976, %v526
  %v978 = vpop.permute.xlu0 %977
  %v980 = vmul.f32 %v978, %v524
  %v981 = vmul.f32 %v978, %v525
  %v982 = vadd.f32 %v944, %v950
  %v983 = vadd.f32 %v945, %v951
  %v984 = vadd.f32 %v956, %v962
  %v985 = vadd.f32 %v957, %v963
  %v986 = vadd.f32 %v968, %v974
  %v987 = vadd.f32 %v969, %v975
  %v988 = vadd.f32 %v982, %v984
  %v989 = vadd.f32 %v983, %v985
  %v990 = vadd.f32 %v986, %v980
  %v991 = vadd.f32 %v987, %v981
  %v992 = vadd.f32 %v988, %v990
  %v993 = vadd.f32 %v989, %v991
  %994 = vrot.lane.b32.xlu0 %v992, 80
  %v995 = vpop.permute.xlu0 %994
  %996 = vrot.lane.b32.xlu0 %v993, 80
  %v997 = vpop.permute.xlu0 %996
  %vm998 = vcmp.lt.s32.totalorder %v425, 80
  %v999 = vsel %vm998, %v995, %v997
  %v1000 = vsel %vm998, %v997, %v995
  %s1001 = scalar_lea.vmem %s5, 6
  %v1002 = vld [vmem:[%s1001] ss:$8 sm:$0x3]
  %v1004 = vperm.slane %v1002, 0
  %v1005 = vperm.slane %v1002, 1
  %v1008 = vmul.f32 %v999, %v1004
  %v1009 = vmul.f32 %v1000, %v1005
  %v1010 = vadd.f32 %v595, %v665
  %v1011 = vadd.f32 %v596, %v666
  %v1012 = vadd.f32 %v735, %v798
  %v1013 = vadd.f32 %v736, %v799
  %v1014 = vadd.f32 %v868, %v938
  %v1015 = vadd.f32 %v869, %v939
  %v1016 = vadd.f32 %v1010, %v1012
  %v1017 = vadd.f32 %v1011, %v1013
  %v1018 = vadd.f32 %v1014, %v1008
  %v1019 = vadd.f32 %v1015, %v1009
  %v1020 = vadd.f32 %v1016, %v1018
  %v1021 = vadd.f32 %v1017, %v1019
  %v1024 = vrot.slane %v1020, 2
  %v1025 = vrot.slane %v1021, 2
  %v1028 = vadd.f32 %v1020, %v1024
  %v1029 = vadd.f32 %v1021, %v1025
  %v1030 = vxor.u32 %v1028, 2147483648
  %v1031 = vxor.u32 %v1029, 2147483648
  %v1032 = vmul.f32 %v1030, 1.442695
  %v1033 = vpow.pop %v1032
  %v1034 = vmul.f32 %v1031, 1.442695
  %v1035 = vpow.pop %v1034
  %v1036 = vadd.f32 %v1033, 1.0
  %v1037 = vadd.f32 %v1035, 1.0
  %v1038 = vrcp.pop %v1036
  %v1039 = vmul.f32 %v1036, %v1038
  %v1040 = vsub.f32 1.0, %v1039
  %v1041 = vmul.f32 %v1038, %v1040
  %v1042 = vadd.f32 %v1038, %v1041
  %vm1043 = vweird.f32 %v1036
  %vm1044 = vweird.f32 %v1038
  %vm1045 = vmor %vm1043, %vm1044
  %v1046 = vsel %vm1045, %v1038, %v1042
  %v1047 = vand.u32 2147483647, %v1036
  %vm1048 = vcmp.eq.f32.partialorder %v1047, 8.507059e+37
  %v1049 = vand.u32 %v1036, 2147483648
  %v1050 = vor.u32 1.1754944e-38, %v1049
  %v1051 = vsel %vm1048, %v1050, %v1046
  %v1052 = vmul.f32 1.0, %v1051
  %v1053 = vrcp.pop %v1037
  %v1054 = vmul.f32 %v1037, %v1053
  %v1055 = vsub.f32 1.0, %v1054
  %v1056 = vmul.f32 %v1053, %v1055
  %v1057 = vadd.f32 %v1053, %v1056
  %vm1058 = vweird.f32 %v1037
  %vm1059 = vweird.f32 %v1053
  %vm1060 = vmor %vm1058, %vm1059
  %v1061 = vsel %vm1060, %v1053, %v1057
  %v1062 = vand.u32 2147483647, %v1037
  %vm1063 = vcmp.eq.f32.partialorder %v1062, 8.507059e+37
  %v1064 = vand.u32 %v1037, 2147483648
  %v1065 = vor.u32 1.1754944e-38, %v1064
  %v1066 = vsel %vm1063, %v1065, %v1061
  %v1067 = vmul.f32 1.0, %v1066
  %v1070 = vrot.slane %v1067, 7
  %vm1071 = vcmask 1040384
  %v1072 = vsel %vm1071, %v1052, %v1070
  %v1073 = vsel %vm403, %v1052, %v1070
  %v1074 = vrot.slane %v1073, 1
  %v1075 = vperm.slane %v1072, 0
  %v1076 = vperm.slane %v1072, 1
  %v1077 = vperm.slane %v1074, 0
  %v1078 = vperm.slane %v1074, 1
  %v1083 = vmul.f32 %v300, %v1075
  %v1084 = vmul.f32 %v301, %v1076
  %v1085 = vmul.f32 %v302, %v1075
  %v1086 = vmul.f32 %v303, %v1076
  %v1087 = vmul.f32 %v304, %v1075
  %v1088 = vmul.f32 %v305, %v1076
  %v1089 = vmul.f32 %v306, %v1075
  %v1090 = vmul.f32 %v307, %v1076
  %v1091 = vmul.f32 %v308, %v1077
  %v1092 = vmul.f32 %v309, %v1078
  %v1093 = vmul.f32 %v310, %v1077
  %v1094 = vmul.f32 %v311, %v1078
  %v1095 = vmul.f32 %v312, %v1077
  %v1096 = vmul.f32 %v313, %v1078
  %v1097 = vmul.f32 %v314, %v1077
  %v1098 = vmul.f32 %v315, %v1078
  %1099 = vst [vmem:[%s6] sm:$0xff] %v1083
  %1100 = vst [vmem:[%s6 + $0x8] sm:$0xff] %v1084
  %1101 = vst [vmem:[%s6 + $0x10] sm:$0xff] %v1085
  %1102 = vst [vmem:[%s6 + $0x18] sm:$0xff] %v1086
  %1103 = vst [vmem:[%s6 + $0x20] sm:$0xff] %v1087
  %1104 = vst [vmem:[%s6 + $0x28] sm:$0xff] %v1088
  %1105 = vst [vmem:[%s6 + $0x30] sm:$0xff] %v1089
  %1106 = vst [vmem:[%s6 + $0x38] sm:$0xff] %v1090
  %1107 = vst [vmem:[%s6 + $0x40] sm:$0xff] %v1091
  %1108 = vst [vmem:[%s6 + $0x48] sm:$0xff] %v1092
  %1109 = vst [vmem:[%s6 + $0x50] sm:$0xff] %v1093
  %1110 = vst [vmem:[%s6 + $0x58] sm:$0xff] %v1094
  %1111 = vst [vmem:[%s6 + $0x60] sm:$0xff] %v1095
  %1112 = vst [vmem:[%s6 + $0x68] sm:$0xff] %v1096
  %1113 = vst [vmem:[%s6 + $0x70] sm:$0xff] %v1097
  %1114 = vst [vmem:[%s6 + $0x78] sm:$0xff] %v1098
  // Predicated region
  $region26: #{testM_forward.1} parent=0 // pred_check
    _
  $region27: #{testM_forward.1} parent=0 // pred_check_branch
    %1116 = sbr.rel (0) target = $region29
  $region28: #{testM_forward.1} parent=0 // pred_region
    _
  $region29: #{testM_forward.1} parent=0 // pred_fallthru
    _
  // Predicated region
  $region30: #{testM_forward.1} parent=0 // pred_check
    _
  $region31: #{testM_forward.1} parent=0 // pred_check_branch
    %1118 = sbr.rel (0) target = $region33
  $region32: #{testM_forward.1} parent=0 // pred_region
    _
  $region33: #{testM_forward.1} parent=0 // pred_fallthru
    _

</llo_original>
